<compile_context>
chip_gen: v5e
topology: v5e:2x2
jax: 0.10.0
libtpu: 0.0.40
codegen_flags: <defaults>
</compile_context>

<pallas_src>
import math
from functools import partial

import jax
import jax.numpy as jnp
import numpy as np
from jax import lax
from jax.experimental import pallas as pl
from jax.experimental.pallas import tpu as pltpu


_INV_SQRT2 = 1.0 / math.sqrt(2.0)
# tap index t = (dy+1)*3 + (dx+1)  == ky*3 + kx of the 3x3 kernel
_TAPS = tuple((dy, dx) for dy in (-1, 0, 1) for dx in (-1, 0, 1))


def _round_up(x, m):
    return (x + m - 1) // m * m


# ----------------------------------------------------------------------------
# Host-side (outside jit) parameter / constant preparation
# ----------------------------------------------------------------------------
def make_boundary_masks(H, W):
    """(9, H*W) f32 tap-validity masks: 1.0 where the 3x3 tap stays inside the image."""
    q = np.arange(H * W)
    r, c = q // W, q % W
    m = np.empty((9, H * W), np.float32)
    for t, (dy, dx) in enumerate(_TAPS):
        m[t] = ((r + dy >= 0) & (r + dy < H) & (c + dx >= 0) & (c + dx < W))
    return m.astype(np.float32)


def fuse_conv3x3_weights(w_hwio, bias, cin_pad):
    """HWIO (3,3,Cin,Cout) weights + (Cout,) bias -> fused (Cout, 9*cin_pad + 8) matrix.

    Column block [t*cin_pad : t*cin_pad+Cin] holds tap t's (Cout, Cin) matrix.  The
    cin_pad-Cin padding columns per tap and 7 of the 8 trailing columns are zero (they
    line up with zero rows of the in-kernel im2col stack); column 9*cin_pad multiplies
    the stack's ones-row, i.e. carries the bias.
    """
    kh, kw, cin, cout = w_hwio.shape
    assert (kh, kw) == (3, 3)
    K = 9 * cin_pad + 8
    wf = np.zeros((cout, K), np.float32)
    w = np.asarray(w_hwio, np.float32)
    for ky in range(3):
        for kx in range(3):
            t = ky * 3 + kx
            wf[:, t * cin_pad:t * cin_pad + cin] = w[ky, kx].T
    wf[:, 9 * cin_pad] = np.asarray(bias, np.float32)
    return wf


# ----------------------------------------------------------------------------
# Kernel
# ----------------------------------------------------------------------------
def _make_cab_kernel(H, W, Nb, Cin, Cmid, Cout, Cp1, Cp2):
    HW = H * W
    # shifted[:, q] = x[:, q + dy*W + dx]   (pltpu.roll: out[i] = in[(i - s) mod L])
    rolls = tuple((-(dy * W + dx)) % HW for (dy, dx) in _TAPS)

    def kernel(x_ref, m_ref, w1_ref, w2_ref, o_ref, s1_ref, s2_ref):
        """One batch-block (Nb images concatenated on lanes) per grid step.

        x_ref  : (Nb, Cin, HW)        lane-dense NCHW input block
        m_ref  : (9, HW)              precomputed 0/1 boundary masks (VMEM-resident)
        w1_ref : (Cmid, 9*Cp1 + 8)    fused conv1 weights (+bias column)
        w2_ref : (Cout, 9*Cp2 + 8)    fused conv2 weights (+bias column)
        o_ref  : (Nb, Cout, HW)       output block
        s1_ref : (9*Cp1 + 8, Nb*HW)   conv1 im2col stack (VMEM scratch)
        s2_ref : (9*Cp2 + 8, Nb*HW)   conv2 im2col stack (VMEM scratch)
        """
        # Re-zero the stacks each step: padding rows have zero weight columns, but
        # stale VMEM could hold NaN/Inf and 0*NaN would poison the MXU accumulation.
        s1_ref[...] = jnp.zeros_like(s1_ref)
        s2_ref[...] = jnp.zeros_like(s2_ref)
        # ones-row -> bias folds into the single matmul
        s1_ref[pl.ds(9 * Cp1, 1), :] = jnp.ones((1, Nb * HW), jnp.float32)
        s2_ref[pl.ds(9 * Cp2, 1), :] = jnp.ones((1, Nb * HW), jnp.float32)

        masks = [m_ref[pl.ds(t, 1), :] for t in range(9)]  # each (1, HW), reused

        def shifted(a, t):
            r = rolls[t]
            if r:
                a = pltpu.roll(a, r, 1)        # XLU lane rotation (off the VPU path)
            return a * masks[t]                # zero the taps that fell off the image

        # ---- conv1 im2col: 9 shifted/masked copies stacked on sublanes ----
        for b in range(Nb):
            xb = x_ref[b]                                          # (Cin, HW)
            for t in range(9):
                s1_ref[pl.ds(t * Cp1, Cin), pl.ds(b * HW, HW)] = shifted(xb, t)

        # ---- conv1 (+bias) as ONE MXU matmul: (Cmid, K1) @ (K1, Nb*HW) ----
        h = jnp.dot(w1_ref[...], s1_ref[...], preferred_element_type=jnp.float32)

        # ---- exact GELU (erf), matches torch nn.GELU(approximate='none') ----
        g = 0.5 * h * (1.0 + lax.erf(h * jnp.float32(_INV_SQRT2)))

        # ---- conv2 im2col ----
        for b in range(Nb):
            gb = g[:, b * HW:(b + 1) * HW]                         # aligned lane slice
            for t in range(9):
                s2_ref[pl.ds(t * Cp2, Cmid), pl.ds(b * HW, HW)] = shifted(gb, t)

        # ---- conv2 (+bias) as ONE MXU matmul: (Cout, K2) @ (K2, Nb*HW) ----
        y = jnp.dot(w2_ref[...], s2_ref[...], preferred_element_type=jnp.float32)

        for b in range(Nb):
            o_ref[b] = y[:, b * HW:(b + 1) * HW].astype(o_ref.dtype)   # unmasked stores

    return kernel


# ----------------------------------------------------------------------------
# Wrapper
# ----------------------------------------------------------------------------
def _pick_images_per_step(N, HW, target_lanes=512):
    """Fold images onto the lane axis until the matmul N dim is >= target_lanes."""
    nb = 1
    while nb < N and N % (nb * 2) == 0 and nb * HW < target_lanes:
        nb *= 2
    return nb


def cab_forward(x_nchw, w1f, w2f, masks, images_per_step=None):
    """x_nchw: (N, C, H, W) f32.  w1f/w2f: host-prefused weights.  masks: (9, H*W)."""
    N, C, H, W = x_nchw.shape
    HW = H * W
    assert HW % 128 == 0, "lane-dense layout assumes H*W to be a multiple of 128"
    Cp1 = _round_up(C, 8)
    Cmid = w1f.shape[0]
    Cout = w2f.shape[0]
    Cp2 = _round_up(Cmid, 8)
    K1, K2 = 9 * Cp1 + 8, 9 * Cp2 + 8
    assert w1f.shape == (Cmid, K1) and w2f.shape == (Cout, K2)
    assert masks.shape == (9, HW)
    assert Cout == C

    Nb = images_per_step if images_per_step is not None else _pick_images_per_step(N, HW)
    assert N % Nb == 0
    NB = N // Nb

    x_flat = x_nchw.reshape(N, C, HW)   # contiguous reshape only, no transpose / pad

    out_flat = pl.pallas_call(
        _make_cab_kernel(H, W, Nb, C, Cmid, Cout, Cp1, Cp2),
        out_shape=jax.ShapeDtypeStruct((N, Cout, HW), jnp.float32),
        grid_spec=pltpu.PrefetchScalarGridSpec(
            num_scalar_prefetch=0,
            grid=(NB,),
            in_specs=[
                pl.BlockSpec((Nb, C, HW), lambda n: (n, 0, 0)),
                pl.BlockSpec((9, HW), lambda n: (0, 0)),       # masks, VMEM-resident
                pl.BlockSpec((Cmid, K1), lambda n: (0, 0)),    # fused conv1 weights
                pl.BlockSpec((Cout, K2), lambda n: (0, 0)),    # fused conv2 weights
            ],
            out_specs=pl.BlockSpec((Nb, Cout, HW), lambda n: (n, 0, 0)),
            scratch_shapes=[
                pltpu.VMEM((K1, Nb * HW), jnp.float32),        # conv1 im2col stack
                pltpu.VMEM((K2, Nb * HW), jnp.float32),        # conv2 im2col stack
            ],
        ),
        compiler_params=pltpu.CompilerParams(
            dimension_semantics=("parallel",)),                # batch blocks independent
    )(x_flat, masks, w1f, w2f)

    return out_flat.reshape(N, Cout, H, W)


cab_forward_jit = jax.jit(cab_forward, static_argnames=("images_per_step",))


# ----------------------------------------------------------------------------
# Plain-JAX reference
# ----------------------------------------------------------------------------
def cab_reference(x_nchw, w1, b1, w2, b2):
    x = jnp.transpose(x_nchw, (0, 2, 3, 1))
    dn = ("NHWC", "HWIO", "NHWC")
    y = lax.conv_general_dilated(x, w1, (1, 1), "SAME", dimension_numbers=dn)
    y = y + b1[None, None, None, :]
    y = jax.nn.gelu(y, approximate=False)
    y = lax.conv_general_dilated(y, w2, (1, 1), "SAME", dimension_numbers=dn)
    y = y + b2[None, None, None, :]
    return jnp.transpose(y, (0, 3, 1, 2))


if __name__ == "__main__":
    # Small shapes consistent with CAB(num_feat=12, compress_ratio=3)
    N, C, H, W = 2, 12, 16, 16
    Cmid = C // 3  # = 4

    key = jax.random.PRNGKey(0)
    kx, kw1, kb1, kw2, kb2 = jax.random.split(key, 5)

    x = jax.random.normal(kx, (N, C, H, W), dtype=jnp.float32)

    # Deterministic param init (Kaiming-uniform-ish scale), HWIO layout.
    fan_in1 = C * 3 * 3
    fan_in2 = Cmid * 3 * 3
    w1 = jax.random.uniform(kw1, (3, 3, C, Cmid), jnp.float32,
                            -1.0 / math.sqrt(fan_in1), 1.0 / math.sqrt(fan_in1))
    b1 = jax.random.uniform(kb1, (Cmid,), jnp.float32,
                            -1.0 / math.sqrt(fan_in1), 1.0 / math.sqrt(fan_in1))
    w2 = jax.random.uniform(kw2, (3, 3, Cmid, C), jnp.float32,
                            -1.0 / math.sqrt(fan_in2), 1.0 / math.sqrt(fan_in2))
    b2 = jax.random.uniform(kb2, (C,), jnp.float32,
                            -1.0 / math.sqrt(fan_in2), 1.0 / math.sqrt(fan_in2))

    # Host-side (outside the jitted call path) weight fusion and mask construction.
    Cp1 = _round_up(C, 8)
    Cp2 = _round_up(Cmid, 8)
    w1f = jnp.asarray(fuse_conv3x3_weights(np.asarray(w1), np.asarray(b1), Cp1))
    w2f = jnp.asarray(fuse_conv3x3_weights(np.asarray(w2), np.asarray(b2), Cp2))
    masks = jnp.asarray(make_boundary_masks(H, W))

    out = jax.block_until_ready(cab_forward_jit(x, w1f, w2f, masks))
    ref = jax.block_until_ready(cab_reference(x, w1, b1, w2, b2))
    np.testing.assert_allclose(np.asarray(out), np.asarray(ref),
                               rtol=1e-4, atol=1e-4)

    print("KERNEL_OK")
</pallas_src>

<mosaic_0001>
module attributes {stable_mosaic.version = 11 : i64} {
  func.func @kernel(%arg0: i32, %arg1: memref<2x12x256xf32, #tpu.memory_space<vmem>>, %arg2: memref<9x256xf32, #tpu.memory_space<vmem>>, %arg3: memref<4x152xf32, #tpu.memory_space<vmem>>, %arg4: memref<12x80xf32, #tpu.memory_space<vmem>>, %arg5: memref<2x12x256xf32, #tpu.memory_space<vmem>>, %arg6: memref<152x512xf32, #tpu.memory_space<vmem>>, %arg7: memref<80x512xf32, #tpu.memory_space<vmem>>) attributes {dimension_semantics = [#tpu.dimension_semantics<parallel>], iteration_bounds = array<i64: 1>, scalar_prefetch = 0 : i64, scratch_operands = 2 : i64, tpu.core_type = #tpu.core_type<tc>, window_params = [{transform_indices = @transform_0, window_bounds = array<i64: 2, 12, 256>}, {pipeline_mode = #tpu.pipeline_mode<synchronous>, transform_indices = @transform_1, window_bounds = array<i64: 9, 256>}, {pipeline_mode = #tpu.pipeline_mode<synchronous>, transform_indices = @transform_2, window_bounds = array<i64: 4, 152>}, {pipeline_mode = #tpu.pipeline_mode<synchronous>, transform_indices = @transform_3, window_bounds = array<i64: 12, 80>}, {transform_indices = @transform_4, window_bounds = array<i64: 2, 12, 256>}]} {
    %cst = arith.constant 0.000000e+00 : f32
    %0 = vector.broadcast %cst : f32 to vector<152x512xf32>
    %c0 = arith.constant 0 : index
    %c0_0 = arith.constant 0 : index
    %1 = vector.load %arg6[%c0, %c0_0] : memref<152x512xf32, #tpu.memory_space<vmem>>, vector<152x512xf32>
    tpu.vector_store %arg6[%c0, %c0_0], %0 {strides = array<i32>} : memref<152x512xf32, #tpu.memory_space<vmem>>, vector<152x512xf32>,
    %cst_1 = arith.constant 0.000000e+00 : f32
    %2 = vector.broadcast %cst_1 : f32 to vector<80x512xf32>
    %c0_2 = arith.constant 0 : index
    %c0_3 = arith.constant 0 : index
    %3 = vector.load %arg7[%c0_2, %c0_3] : memref<80x512xf32, #tpu.memory_space<vmem>>, vector<80x512xf32>
    tpu.vector_store %arg7[%c0_2, %c0_3], %2 {strides = array<i32>} : memref<80x512xf32, #tpu.memory_space<vmem>>, vector<80x512xf32>,
    %cst_4 = arith.constant 1.000000e+00 : f32
    %4 = vector.broadcast %cst_4 : f32 to vector<1x512xf32>
    %c144 = arith.constant 144 : index
    %c0_5 = arith.constant 0 : index
    %5 = vector.load %arg6[%c144, %c0_5] : memref<152x512xf32, #tpu.memory_space<vmem>>, vector<1x512xf32>
    tpu.vector_store %arg6[%c144, %c0_5], %4 {strides = array<i32>} : memref<152x512xf32, #tpu.memory_space<vmem>>, vector<1x512xf32>,
    %cst_6 = arith.constant 1.000000e+00 : f32
    %6 = vector.broadcast %cst_6 : f32 to vector<1x512xf32>
    %c72 = arith.constant 72 : index
    %c0_7 = arith.constant 0 : index
    %7 = vector.load %arg7[%c72, %c0_7] : memref<80x512xf32, #tpu.memory_space<vmem>>, vector<1x512xf32>
    tpu.vector_store %arg7[%c72, %c0_7], %6 {strides = array<i32>} : memref<80x512xf32, #tpu.memory_space<vmem>>, vector<1x512xf32>,
    %c0_8 = arith.constant 0 : index
    %c0_9 = arith.constant 0 : index
    %8 = vector.load %arg2[%c0_8, %c0_9] : memref<9x256xf32, #tpu.memory_space<vmem>>, vector<1x256xf32>
    %c1 = arith.constant 1 : index
    %c0_10 = arith.constant 0 : index
    %9 = vector.load %arg2[%c1, %c0_10] : memref<9x256xf32, #tpu.memory_space<vmem>>, vector<1x256xf32>
    %c2 = arith.constant 2 : index
    %c0_11 = arith.constant 0 : index
    %10 = vector.load %arg2[%c2, %c0_11] : memref<9x256xf32, #tpu.memory_space<vmem>>, vector<1x256xf32>
    %c3 = arith.constant 3 : index
    %c0_12 = arith.constant 0 : index
    %11 = vector.load %arg2[%c3, %c0_12] : memref<9x256xf32, #tpu.memory_space<vmem>>, vector<1x256xf32>
    %c4 = arith.constant 4 : index
    %c0_13 = arith.constant 0 : index
    %12 = vector.load %arg2[%c4, %c0_13] : memref<9x256xf32, #tpu.memory_space<vmem>>, vector<1x256xf32>
    %c5 = arith.constant 5 : index
    %c0_14 = arith.constant 0 : index
    %13 = vector.load %arg2[%c5, %c0_14] : memref<9x256xf32, #tpu.memory_space<vmem>>, vector<1x256xf32>
    %c6 = arith.constant 6 : index
    %c0_15 = arith.constant 0 : index
    %14 = vector.load %arg2[%c6, %c0_15] : memref<9x256xf32, #tpu.memory_space<vmem>>, vector<1x256xf32>
    %c7 = arith.constant 7 : index
    %c0_16 = arith.constant 0 : index
    %15 = vector.load %arg2[%c7, %c0_16] : memref<9x256xf32, #tpu.memory_space<vmem>>, vector<1x256xf32>
    %c8 = arith.constant 8 : index
    %c0_17 = arith.constant 0 : index
    %16 = vector.load %arg2[%c8, %c0_17] : memref<9x256xf32, #tpu.memory_space<vmem>>, vector<1x256xf32>
    %c0_18 = arith.constant 0 : index
    %c0_19 = arith.constant 0 : index
    %c0_20 = arith.constant 0 : index
    %17 = vector.load %arg1[%c0_18, %c0_19, %c0_20] : memref<2x12x256xf32, #tpu.memory_space<vmem>>, vector<1x12x256xf32>
    %18 = vector.shape_cast %17 : vector<1x12x256xf32> to vector<12x256xf32>
    %c17_i32 = arith.constant 17 : i32
    %19 = tpu.dynamic_rotate %18 by %c17_i32 dim 1 : vector<12x256xf32>, i32 -> vector<12x256xf32>
    %20 = vector.broadcast %8 : vector<1x256xf32> to vector<12x256xf32>
    %21 = arith.mulf %19, %20 : vector<12x256xf32>
    %c0_21 = arith.constant 0 : index
    %c0_22 = arith.constant 0 : index
    %22 = vector.load %arg6[%c0_21, %c0_22] : memref<152x512xf32, #tpu.memory_space<vmem>>, vector<12x256xf32>
    tpu.vector_store %arg6[%c0_21, %c0_22], %21 {strides = array<i32>} : memref<152x512xf32, #tpu.memory_space<vmem>>, vector<12x256xf32>,
    %c16_i32 = arith.constant 16 : i32
    %23 = tpu.dynamic_rotate %18 by %c16_i32 dim 1 : vector<12x256xf32>, i32 -> vector<12x256xf32>
    %24 = vector.broadcast %9 : vector<1x256xf32> to vector<12x256xf32>
    %25 = arith.mulf %23, %24 : vector<12x256xf32>
    %c16 = arith.constant 16 : index
    %c0_23 = arith.constant 0 : index
    %26 = vector.load %arg6[%c16, %c0_23] : memref<152x512xf32, #tpu.memory_space<vmem>>, vector<12x256xf32>
    tpu.vector_store %arg6[%c16, %c0_23], %25 {strides = array<i32>} : memref<152x512xf32, #tpu.memory_space<vmem>>, vector<12x256xf32>,
    %c15_i32 = arith.constant 15 : i32
    %27 = tpu.dynamic_rotate %18 by %c15_i32 dim 1 : vector<12x256xf32>, i32 -> vector<12x256xf32>
    %28 = vector.broadcast %10 : vector<1x256xf32> to vector<12x256xf32>
    %29 = arith.mulf %27, %28 : vector<12x256xf32>
    %c32 = arith.constant 32 : index
    %c0_24 = arith.constant 0 : index
    %30 = vector.load %arg6[%c32, %c0_24] : memref<152x512xf32, #tpu.memory_space<vmem>>, vector<12x256xf32>
    tpu.vector_store %arg6[%c32, %c0_24], %29 {strides = array<i32>} : memref<152x512xf32, #tpu.memory_space<vmem>>, vector<12x256xf32>,
    %c1_i32 = arith.constant 1 : i32
    %31 = tpu.dynamic_rotate %18 by %c1_i32 dim 1 : vector<12x256xf32>, i32 -> vector<12x256xf32>
    %32 = vector.broadcast %11 : vector<1x256xf32> to vector<12x256xf32>
    %33 = arith.mulf %31, %32 : vector<12x256xf32>
    %c48 = arith.constant 48 : index
    %c0_25 = arith.constant 0 : index
    %34 = vector.load %arg6[%c48, %c0_25] : memref<152x512xf32, #tpu.memory_space<vmem>>, vector<12x256xf32>
    tpu.vector_store %arg6[%c48, %c0_25], %33 {strides = array<i32>} : memref<152x512xf32, #tpu.memory_space<vmem>>, vector<12x256xf32>,
    %35 = vector.broadcast %12 : vector<1x256xf32> to vector<12x256xf32>
    %36 = arith.mulf %18, %35 : vector<12x256xf32>
    %c64 = arith.constant 64 : index
    %c0_26 = arith.constant 0 : index
    %37 = vector.load %arg6[%c64, %c0_26] : memref<152x512xf32, #tpu.memory_space<vmem>>, vector<12x256xf32>
    tpu.vector_store %arg6[%c64, %c0_26], %36 {strides = array<i32>} : memref<152x512xf32, #tpu.memory_space<vmem>>, vector<12x256xf32>,
    %c255_i32 = arith.constant 255 : i32
    %38 = tpu.dynamic_rotate %18 by %c255_i32 dim 1 : vector<12x256xf32>, i32 -> vector<12x256xf32>
    %39 = vector.broadcast %13 : vector<1x256xf32> to vector<12x256xf32>
    %40 = arith.mulf %38, %39 : vector<12x256xf32>
    %c80 = arith.constant 80 : index
    %c0_27 = arith.constant 0 : index
    %41 = vector.load %arg6[%c80, %c0_27] : memref<152x512xf32, #tpu.memory_space<vmem>>, vector<12x256xf32>
    tpu.vector_store %arg6[%c80, %c0_27], %40 {strides = array<i32>} : memref<152x512xf32, #tpu.memory_space<vmem>>, vector<12x256xf32>,
    %c241_i32 = arith.constant 241 : i32
    %42 = tpu.dynamic_rotate %18 by %c241_i32 dim 1 : vector<12x256xf32>, i32 -> vector<12x256xf32>
    %43 = vector.broadcast %14 : vector<1x256xf32> to vector<12x256xf32>
    %44 = arith.mulf %42, %43 : vector<12x256xf32>
    %c96 = arith.constant 96 : index
    %c0_28 = arith.constant 0 : index
    %45 = vector.load %arg6[%c96, %c0_28] : memref<152x512xf32, #tpu.memory_space<vmem>>, vector<12x256xf32>
    tpu.vector_store %arg6[%c96, %c0_28], %44 {strides = array<i32>} : memref<152x512xf32, #tpu.memory_space<vmem>>, vector<12x256xf32>,
    %c240_i32 = arith.constant 240 : i32
    %46 = tpu.dynamic_rotate %18 by %c240_i32 dim 1 : vector<12x256xf32>, i32 -> vector<12x256xf32>
    %47 = vector.broadcast %15 : vector<1x256xf32> to vector<12x256xf32>
    %48 = arith.mulf %46, %47 : vector<12x256xf32>
    %c112 = arith.constant 112 : index
    %c0_29 = arith.constant 0 : index
    %49 = vector.load %arg6[%c112, %c0_29] : memref<152x512xf32, #tpu.memory_space<vmem>>, vector<12x256xf32>
    tpu.vector_store %arg6[%c112, %c0_29], %48 {strides = array<i32>} : memref<152x512xf32, #tpu.memory_space<vmem>>, vector<12x256xf32>,
    %c239_i32 = arith.constant 239 : i32
    %50 = tpu.dynamic_rotate %18 by %c239_i32 dim 1 : vector<12x256xf32>, i32 -> vector<12x256xf32>
    %51 = vector.broadcast %16 : vector<1x256xf32> to vector<12x256xf32>
    %52 = arith.mulf %50, %51 : vector<12x256xf32>
    %c128 = arith.constant 128 : index
    %c0_30 = arith.constant 0 : index
    %53 = vector.load %arg6[%c128, %c0_30] : memref<152x512xf32, #tpu.memory_space<vmem>>, vector<12x256xf32>
    tpu.vector_store %arg6[%c128, %c0_30], %52 {strides = array<i32>} : memref<152x512xf32, #tpu.memory_space<vmem>>, vector<12x256xf32>,
    %c1_31 = arith.constant 1 : index
    %c0_32 = arith.constant 0 : index
    %c0_33 = arith.constant 0 : index
    %54 = vector.load %arg1[%c1_31, %c0_32, %c0_33] : memref<2x12x256xf32, #tpu.memory_space<vmem>>, vector<1x12x256xf32>
    %55 = vector.shape_cast %54 : vector<1x12x256xf32> to vector<12x256xf32>
    %c17_i32_34 = arith.constant 17 : i32
    %56 = tpu.dynamic_rotate %55 by %c17_i32_34 dim 1 : vector<12x256xf32>, i32 -> vector<12x256xf32>
    %57 = vector.broadcast %8 : vector<1x256xf32> to vector<12x256xf32>
    %58 = arith.mulf %56, %57 : vector<12x256xf32>
    %c0_35 = arith.constant 0 : index
    %c256 = arith.constant 256 : index
    %59 = vector.load %arg6[%c0_35, %c256] : memref<152x512xf32, #tpu.memory_space<vmem>>, vector<12x256xf32>
    tpu.vector_store %arg6[%c0_35, %c256], %58 {strides = array<i32>} : memref<152x512xf32, #tpu.memory_space<vmem>>, vector<12x256xf32>,
    %c16_i32_36 = arith.constant 16 : i32
    %60 = tpu.dynamic_rotate %55 by %c16_i32_36 dim 1 : vector<12x256xf32>, i32 -> vector<12x256xf32>
    %61 = vector.broadcast %9 : vector<1x256xf32> to vector<12x256xf32>
    %62 = arith.mulf %60, %61 : vector<12x256xf32>
    %c16_37 = arith.constant 16 : index
    %c256_38 = arith.constant 256 : index
    %63 = vector.load %arg6[%c16_37, %c256_38] : memref<152x512xf32, #tpu.memory_space<vmem>>, vector<12x256xf32>
    tpu.vector_store %arg6[%c16_37, %c256_38], %62 {strides = array<i32>} : memref<152x512xf32, #tpu.memory_space<vmem>>, vector<12x256xf32>,
    %c15_i32_39 = arith.constant 15 : i32
    %64 = tpu.dynamic_rotate %55 by %c15_i32_39 dim 1 : vector<12x256xf32>, i32 -> vector<12x256xf32>
    %65 = vector.broadcast %10 : vector<1x256xf32> to vector<12x256xf32>
    %66 = arith.mulf %64, %65 : vector<12x256xf32>
    %c32_40 = arith.constant 32 : index
    %c256_41 = arith.constant 256 : index
    %67 = vector.load %arg6[%c32_40, %c256_41] : memref<152x512xf32, #tpu.memory_space<vmem>>, vector<12x256xf32>
    tpu.vector_store %arg6[%c32_40, %c256_41], %66 {strides = array<i32>} : memref<152x512xf32, #tpu.memory_space<vmem>>, vector<12x256xf32>,
    %c1_i32_42 = arith.constant 1 : i32
    %68 = tpu.dynamic_rotate %55 by %c1_i32_42 dim 1 : vector<12x256xf32>, i32 -> vector<12x256xf32>
    %69 = vector.broadcast %11 : vector<1x256xf32> to vector<12x256xf32>
    %70 = arith.mulf %68, %69 : vector<12x256xf32>
    %c48_43 = arith.constant 48 : index
    %c256_44 = arith.constant 256 : index
    %71 = vector.load %arg6[%c48_43, %c256_44] : memref<152x512xf32, #tpu.memory_space<vmem>>, vector<12x256xf32>
    tpu.vector_store %arg6[%c48_43, %c256_44], %70 {strides = array<i32>} : memref<152x512xf32, #tpu.memory_space<vmem>>, vector<12x256xf32>,
    %72 = vector.broadcast %12 : vector<1x256xf32> to vector<12x256xf32>
    %73 = arith.mulf %55, %72 : vector<12x256xf32>
    %c64_45 = arith.constant 64 : index
    %c256_46 = arith.constant 256 : index
    %74 = vector.load %arg6[%c64_45, %c256_46] : memref<152x512xf32, #tpu.memory_space<vmem>>, vector<12x256xf32>
    tpu.vector_store %arg6[%c64_45, %c256_46], %73 {strides = array<i32>} : memref<152x512xf32, #tpu.memory_space<vmem>>, vector<12x256xf32>,
    %c255_i32_47 = arith.constant 255 : i32
    %75 = tpu.dynamic_rotate %55 by %c255_i32_47 dim 1 : vector<12x256xf32>, i32 -> vector<12x256xf32>
    %76 = vector.broadcast %13 : vector<1x256xf32> to vector<12x256xf32>
    %77 = arith.mulf %75, %76 : vector<12x256xf32>
    %c80_48 = arith.constant 80 : index
    %c256_49 = arith.constant 256 : index
    %78 = vector.load %arg6[%c80_48, %c256_49] : memref<152x512xf32, #tpu.memory_space<vmem>>, vector<12x256xf32>
    tpu.vector_store %arg6[%c80_48, %c256_49], %77 {strides = array<i32>} : memref<152x512xf32, #tpu.memory_space<vmem>>, vector<12x256xf32>,
    %c241_i32_50 = arith.constant 241 : i32
    %79 = tpu.dynamic_rotate %55 by %c241_i32_50 dim 1 : vector<12x256xf32>, i32 -> vector<12x256xf32>
    %80 = vector.broadcast %14 : vector<1x256xf32> to vector<12x256xf32>
    %81 = arith.mulf %79, %80 : vector<12x256xf32>
    %c96_51 = arith.constant 96 : index
    %c256_52 = arith.constant 256 : index
    %82 = vector.load %arg6[%c96_51, %c256_52] : memref<152x512xf32, #tpu.memory_space<vmem>>, vector<12x256xf32>
    tpu.vector_store %arg6[%c96_51, %c256_52], %81 {strides = array<i32>} : memref<152x512xf32, #tpu.memory_space<vmem>>, vector<12x256xf32>,
    %c240_i32_53 = arith.constant 240 : i32
    %83 = tpu.dynamic_rotate %55 by %c240_i32_53 dim 1 : vector<12x256xf32>, i32 -> vector<12x256xf32>
    %84 = vector.broadcast %15 : vector<1x256xf32> to vector<12x256xf32>
    %85 = arith.mulf %83, %84 : vector<12x256xf32>
    %c112_54 = arith.constant 112 : index
    %c256_55 = arith.constant 256 : index
    %86 = vector.load %arg6[%c112_54, %c256_55] : memref<152x512xf32, #tpu.memory_space<vmem>>, vector<12x256xf32>
    tpu.vector_store %arg6[%c112_54, %c256_55], %85 {strides = array<i32>} : memref<152x512xf32, #tpu.memory_space<vmem>>, vector<12x256xf32>,
    %c239_i32_56 = arith.constant 239 : i32
    %87 = tpu.dynamic_rotate %55 by %c239_i32_56 dim 1 : vector<12x256xf32>, i32 -> vector<12x256xf32>
    %88 = vector.broadcast %16 : vector<1x256xf32> to vector<12x256xf32>
    %89 = arith.mulf %87, %88 : vector<12x256xf32>
    %c128_57 = arith.constant 128 : index
    %c256_58 = arith.constant 256 : index
    %90 = vector.load %arg6[%c128_57, %c256_58] : memref<152x512xf32, #tpu.memory_space<vmem>>, vector<12x256xf32>
    tpu.vector_store %arg6[%c128_57, %c256_58], %89 {strides = array<i32>} : memref<152x512xf32, #tpu.memory_space<vmem>>, vector<12x256xf32>,
    %c0_59 = arith.constant 0 : index
    %c0_60 = arith.constant 0 : index
    %91 = vector.load %arg3[%c0_59, %c0_60] : memref<4x152xf32, #tpu.memory_space<vmem>>, vector<4x152xf32>
    %c0_61 = arith.constant 0 : index
    %c0_62 = arith.constant 0 : index
    %92 = vector.load %arg6[%c0_61, %c0_62] : memref<152x512xf32, #tpu.memory_space<vmem>>, vector<152x512xf32>
    %cst_63 = arith.constant dense<0.000000e+00> : vector<4x512xf32>
    %93 = tpu.matmul %91, %92, %cst_63 {dimension_numbers = #tpu.dot_dimension_numbers<[1], [0], [0], [1], [0, 0, 1, 1], [], []>} : vector<4x152xf32>, vector<152x512xf32>, vector<4x512xf32> -> vector<4x512xf32>
    %cst_64 = arith.constant 5.000000e-01 : f32
    %94 = vector.broadcast %cst_64 : f32 to vector<4x512xf32>
    %95 = arith.mulf %94, %93 : vector<4x512xf32>
    %cst_65 = arith.constant 0.707106769 : f32
    %96 = vector.broadcast %cst_65 : f32 to vector<4x512xf32>
    %97 = arith.mulf %93, %96 : vector<4x512xf32>
    %98 = math.erf %97 : vector<4x512xf32>
    %cst_66 = arith.constant 1.000000e+00 : f32
    %99 = vector.broadcast %cst_66 : f32 to vector<4x512xf32>
    %100 = arith.addf %99, %98 : vector<4x512xf32>
    %101 = arith.mulf %95, %100 : vector<4x512xf32>
    %102 = vector.extract_strided_slice %101 {offsets = [0, 0], sizes = [4, 256], strides = [1, 1]} : vector<4x512xf32> to vector<4x256xf32>
    %c17_i32_67 = arith.constant 17 : i32
    %103 = tpu.dynamic_rotate %102 by %c17_i32_67 dim 1 : vector<4x256xf32>, i32 -> vector<4x256xf32>
    %104 = vector.broadcast %8 : vector<1x256xf32> to vector<4x256xf32>
    %105 = arith.mulf %103, %104 : vector<4x256xf32>
    %c0_68 = arith.constant 0 : index
    %c0_69 = arith.constant 0 : index
    %106 = vector.load %arg7[%c0_68, %c0_69] : memref<80x512xf32, #tpu.memory_space<vmem>>, vector<4x256xf32>
    tpu.vector_store %arg7[%c0_68, %c0_69], %105 {strides = array<i32>} : memref<80x512xf32, #tpu.memory_space<vmem>>, vector<4x256xf32>,
    %c16_i32_70 = arith.constant 16 : i32
    %107 = tpu.dynamic_rotate %102 by %c16_i32_70 dim 1 : vector<4x256xf32>, i32 -> vector<4x256xf32>
    %108 = vector.broadcast %9 : vector<1x256xf32> to vector<4x256xf32>
    %109 = arith.mulf %107, %108 : vector<4x256xf32>
    %c8_71 = arith.constant 8 : index
    %c0_72 = arith.constant 0 : index
    %110 = vector.load %arg7[%c8_71, %c0_72] : memref<80x512xf32, #tpu.memory_space<vmem>>, vector<4x256xf32>
    tpu.vector_store %arg7[%c8_71, %c0_72], %109 {strides = array<i32>} : memref<80x512xf32, #tpu.memory_space<vmem>>, vector<4x256xf32>,
    %c15_i32_73 = arith.constant 15 : i32
    %111 = tpu.dynamic_rotate %102 by %c15_i32_73 dim 1 : vector<4x256xf32>, i32 -> vector<4x256xf32>
    %112 = vector.broadcast %10 : vector<1x256xf32> to vector<4x256xf32>
    %113 = arith.mulf %111, %112 : vector<4x256xf32>
    %c16_74 = arith.constant 16 : index
    %c0_75 = arith.constant 0 : index
    %114 = vector.load %arg7[%c16_74, %c0_75] : memref<80x512xf32, #tpu.memory_space<vmem>>, vector<4x256xf32>
    tpu.vector_store %arg7[%c16_74, %c0_75], %113 {strides = array<i32>} : memref<80x512xf32, #tpu.memory_space<vmem>>, vector<4x256xf32>,
    %c1_i32_76 = arith.constant 1 : i32
    %115 = tpu.dynamic_rotate %102 by %c1_i32_76 dim 1 : vector<4x256xf32>, i32 -> vector<4x256xf32>
    %116 = vector.broadcast %11 : vector<1x256xf32> to vector<4x256xf32>
    %117 = arith.mulf %115, %116 : vector<4x256xf32>
    %c24 = arith.constant 24 : index
    %c0_77 = arith.constant 0 : index
    %118 = vector.load %arg7[%c24, %c0_77] : memref<80x512xf32, #tpu.memory_space<vmem>>, vector<4x256xf32>
    tpu.vector_store %arg7[%c24, %c0_77], %117 {strides = array<i32>} : memref<80x512xf32, #tpu.memory_space<vmem>>, vector<4x256xf32>,
    %119 = vector.broadcast %12 : vector<1x256xf32> to vector<4x256xf32>
    %120 = arith.mulf %102, %119 : vector<4x256xf32>
    %c32_78 = arith.constant 32 : index
    %c0_79 = arith.constant 0 : index
    %121 = vector.load %arg7[%c32_78, %c0_79] : memref<80x512xf32, #tpu.memory_space<vmem>>, vector<4x256xf32>
    tpu.vector_store %arg7[%c32_78, %c0_79], %120 {strides = array<i32>} : memref<80x512xf32, #tpu.memory_space<vmem>>, vector<4x256xf32>,
    %c255_i32_80 = arith.constant 255 : i32
    %122 = tpu.dynamic_rotate %102 by %c255_i32_80 dim 1 : vector<4x256xf32>, i32 -> vector<4x256xf32>
    %123 = vector.broadcast %13 : vector<1x256xf32> to vector<4x256xf32>
    %124 = arith.mulf %122, %123 : vector<4x256xf32>
    %c40 = arith.constant 40 : index
    %c0_81 = arith.constant 0 : index
    %125 = vector.load %arg7[%c40, %c0_81] : memref<80x512xf32, #tpu.memory_space<vmem>>, vector<4x256xf32>
    tpu.vector_store %arg7[%c40, %c0_81], %124 {strides = array<i32>} : memref<80x512xf32, #tpu.memory_space<vmem>>, vector<4x256xf32>,
    %c241_i32_82 = arith.constant 241 : i32
    %126 = tpu.dynamic_rotate %102 by %c241_i32_82 dim 1 : vector<4x256xf32>, i32 -> vector<4x256xf32>
    %127 = vector.broadcast %14 : vector<1x256xf32> to vector<4x256xf32>
    %128 = arith.mulf %126, %127 : vector<4x256xf32>
    %c48_83 = arith.constant 48 : index
    %c0_84 = arith.constant 0 : index
    %129 = vector.load %arg7[%c48_83, %c0_84] : memref<80x512xf32, #tpu.memory_space<vmem>>, vector<4x256xf32>
    tpu.vector_store %arg7[%c48_83, %c0_84], %128 {strides = array<i32>} : memref<80x512xf32, #tpu.memory_space<vmem>>, vector<4x256xf32>,
    %c240_i32_85 = arith.constant 240 : i32
    %130 = tpu.dynamic_rotate %102 by %c240_i32_85 dim 1 : vector<4x256xf32>, i32 -> vector<4x256xf32>
    %131 = vector.broadcast %15 : vector<1x256xf32> to vector<4x256xf32>
    %132 = arith.mulf %130, %131 : vector<4x256xf32>
    %c56 = arith.constant 56 : index
    %c0_86 = arith.constant 0 : index
    %133 = vector.load %arg7[%c56, %c0_86] : memref<80x512xf32, #tpu.memory_space<vmem>>, vector<4x256xf32>
    tpu.vector_store %arg7[%c56, %c0_86], %132 {strides = array<i32>} : memref<80x512xf32, #tpu.memory_space<vmem>>, vector<4x256xf32>,
    %c239_i32_87 = arith.constant 239 : i32
    %134 = tpu.dynamic_rotate %102 by %c239_i32_87 dim 1 : vector<4x256xf32>, i32 -> vector<4x256xf32>
    %135 = vector.broadcast %16 : vector<1x256xf32> to vector<4x256xf32>
    %136 = arith.mulf %134, %135 : vector<4x256xf32>
    %c64_88 = arith.constant 64 : index
    %c0_89 = arith.constant 0 : index
    %137 = vector.load %arg7[%c64_88, %c0_89] : memref<80x512xf32, #tpu.memory_space<vmem>>, vector<4x256xf32>
    tpu.vector_store %arg7[%c64_88, %c0_89], %136 {strides = array<i32>} : memref<80x512xf32, #tpu.memory_space<vmem>>, vector<4x256xf32>,
    %138 = vector.extract_strided_slice %101 {offsets = [0, 256], sizes = [4, 256], strides = [1, 1]} : vector<4x512xf32> to vector<4x256xf32>
    %c17_i32_90 = arith.constant 17 : i32
    %139 = tpu.dynamic_rotate %138 by %c17_i32_90 dim 1 : vector<4x256xf32>, i32 -> vector<4x256xf32>
    %140 = vector.broadcast %8 : vector<1x256xf32> to vector<4x256xf32>
    %141 = arith.mulf %139, %140 : vector<4x256xf32>
    %c0_91 = arith.constant 0 : index
    %c256_92 = arith.constant 256 : index
    %142 = vector.load %arg7[%c0_91, %c256_92] : memref<80x512xf32, #tpu.memory_space<vmem>>, vector<4x256xf32>
    tpu.vector_store %arg7[%c0_91, %c256_92], %141 {strides = array<i32>} : memref<80x512xf32, #tpu.memory_space<vmem>>, vector<4x256xf32>,
    %c16_i32_93 = arith.constant 16 : i32
    %143 = tpu.dynamic_rotate %138 by %c16_i32_93 dim 1 : vector<4x256xf32>, i32 -> vector<4x256xf32>
    %144 = vector.broadcast %9 : vector<1x256xf32> to vector<4x256xf32>
    %145 = arith.mulf %143, %144 : vector<4x256xf32>
    %c8_94 = arith.constant 8 : index
    %c256_95 = arith.constant 256 : index
    %146 = vector.load %arg7[%c8_94, %c256_95] : memref<80x512xf32, #tpu.memory_space<vmem>>, vector<4x256xf32>
    tpu.vector_store %arg7[%c8_94, %c256_95], %145 {strides = array<i32>} : memref<80x512xf32, #tpu.memory_space<vmem>>, vector<4x256xf32>,
    %c15_i32_96 = arith.constant 15 : i32
    %147 = tpu.dynamic_rotate %138 by %c15_i32_96 dim 1 : vector<4x256xf32>, i32 -> vector<4x256xf32>
    %148 = vector.broadcast %10 : vector<1x256xf32> to vector<4x256xf32>
    %149 = arith.mulf %147, %148 : vector<4x256xf32>
    %c16_97 = arith.constant 16 : index
    %c256_98 = arith.constant 256 : index
    %150 = vector.load %arg7[%c16_97, %c256_98] : memref<80x512xf32, #tpu.memory_space<vmem>>, vector<4x256xf32>
    tpu.vector_store %arg7[%c16_97, %c256_98], %149 {strides = array<i32>} : memref<80x512xf32, #tpu.memory_space<vmem>>, vector<4x256xf32>,
    %c1_i32_99 = arith.constant 1 : i32
    %151 = tpu.dynamic_rotate %138 by %c1_i32_99 dim 1 : vector<4x256xf32>, i32 -> vector<4x256xf32>
    %152 = vector.broadcast %11 : vector<1x256xf32> to vector<4x256xf32>
    %153 = arith.mulf %151, %152 : vector<4x256xf32>
    %c24_100 = arith.constant 24 : index
    %c256_101 = arith.constant 256 : index
    %154 = vector.load %arg7[%c24_100, %c256_101] : memref<80x512xf32, #tpu.memory_space<vmem>>, vector<4x256xf32>
    tpu.vector_store %arg7[%c24_100, %c256_101], %153 {strides = array<i32>} : memref<80x512xf32, #tpu.memory_space<vmem>>, vector<4x256xf32>,
    %155 = vector.broadcast %12 : vector<1x256xf32> to vector<4x256xf32>
    %156 = arith.mulf %138, %155 : vector<4x256xf32>
    %c32_102 = arith.constant 32 : index
    %c256_103 = arith.constant 256 : index
    %157 = vector.load %arg7[%c32_102, %c256_103] : memref<80x512xf32, #tpu.memory_space<vmem>>, vector<4x256xf32>
    tpu.vector_store %arg7[%c32_102, %c256_103], %156 {strides = array<i32>} : memref<80x512xf32, #tpu.memory_space<vmem>>, vector<4x256xf32>,
    %c255_i32_104 = arith.constant 255 : i32
    %158 = tpu.dynamic_rotate %138 by %c255_i32_104 dim 1 : vector<4x256xf32>, i32 -> vector<4x256xf32>
    %159 = vector.broadcast %13 : vector<1x256xf32> to vector<4x256xf32>
    %160 = arith.mulf %158, %159 : vector<4x256xf32>
    %c40_105 = arith.constant 40 : index
    %c256_106 = arith.constant 256 : index
    %161 = vector.load %arg7[%c40_105, %c256_106] : memref<80x512xf32, #tpu.memory_space<vmem>>, vector<4x256xf32>
    tpu.vector_store %arg7[%c40_105, %c256_106], %160 {strides = array<i32>} : memref<80x512xf32, #tpu.memory_space<vmem>>, vector<4x256xf32>,
    %c241_i32_107 = arith.constant 241 : i32
    %162 = tpu.dynamic_rotate %138 by %c241_i32_107 dim 1 : vector<4x256xf32>, i32 -> vector<4x256xf32>
    %163 = vector.broadcast %14 : vector<1x256xf32> to vector<4x256xf32>
    %164 = arith.mulf %162, %163 : vector<4x256xf32>
    %c48_108 = arith.constant 48 : index
    %c256_109 = arith.constant 256 : index
    %165 = vector.load %arg7[%c48_108, %c256_109] : memref<80x512xf32, #tpu.memory_space<vmem>>, vector<4x256xf32>
    tpu.vector_store %arg7[%c48_108, %c256_109], %164 {strides = array<i32>} : memref<80x512xf32, #tpu.memory_space<vmem>>, vector<4x256xf32>,
    %c240_i32_110 = arith.constant 240 : i32
    %166 = tpu.dynamic_rotate %138 by %c240_i32_110 dim 1 : vector<4x256xf32>, i32 -> vector<4x256xf32>
    %167 = vector.broadcast %15 : vector<1x256xf32> to vector<4x256xf32>
    %168 = arith.mulf %166, %167 : vector<4x256xf32>
    %c56_111 = arith.constant 56 : index
    %c256_112 = arith.constant 256 : index
    %169 = vector.load %arg7[%c56_111, %c256_112] : memref<80x512xf32, #tpu.memory_space<vmem>>, vector<4x256xf32>
    tpu.vector_store %arg7[%c56_111, %c256_112], %168 {strides = array<i32>} : memref<80x512xf32, #tpu.memory_space<vmem>>, vector<4x256xf32>,
    %c239_i32_113 = arith.constant 239 : i32
    %170 = tpu.dynamic_rotate %138 by %c239_i32_113 dim 1 : vector<4x256xf32>, i32 -> vector<4x256xf32>
    %171 = vector.broadcast %16 : vector<1x256xf32> to vector<4x256xf32>
    %172 = arith.mulf %170, %171 : vector<4x256xf32>
    %c64_114 = arith.constant 64 : index
    %c256_115 = arith.constant 256 : index
    %173 = vector.load %arg7[%c64_114, %c256_115] : memref<80x512xf32, #tpu.memory_space<vmem>>, vector<4x256xf32>
    tpu.vector_store %arg7[%c64_114, %c256_115], %172 {strides = array<i32>} : memref<80x512xf32, #tpu.memory_space<vmem>>, vector<4x256xf32>,
    %c0_116 = arith.constant 0 : index
    %c0_117 = arith.constant 0 : index
    %174 = vector.load %arg4[%c0_116, %c0_117] : memref<12x80xf32, #tpu.memory_space<vmem>>, vector<12x80xf32>
    %c0_118 = arith.constant 0 : index
    %c0_119 = arith.constant 0 : index
    %175 = vector.load %arg7[%c0_118, %c0_119] : memref<80x512xf32, #tpu.memory_space<vmem>>, vector<80x512xf32>
    %cst_120 = arith.constant dense<0.000000e+00> : vector<12x512xf32>
    %176 = tpu.matmul %174, %175, %cst_120 {dimension_numbers = #tpu.dot_dimension_numbers<[1], [0], [0], [1], [0, 0, 1, 1], [], []>} : vector<12x80xf32>, vector<80x512xf32>, vector<12x512xf32> -> vector<12x512xf32>
    %177 = vector.extract_strided_slice %176 {offsets = [0, 0], sizes = [12, 256], strides = [1, 1]} : vector<12x512xf32> to vector<12x256xf32>
    %c0_121 = arith.constant 0 : index
    %c0_122 = arith.constant 0 : index
    %c0_123 = arith.constant 0 : index
    %178 = vector.load %arg5[%c0_121, %c0_122, %c0_123] : memref<2x12x256xf32, #tpu.memory_space<vmem>>, vector<1x12x256xf32>
    %179 = vector.shape_cast %178 : vector<1x12x256xf32> to vector<12x256xf32>
    %180 = vector.shape_cast %177 : vector<12x256xf32> to vector<1x12x256xf32>
    tpu.vector_store %arg5[%c0_121, %c0_122, %c0_123], %180 {strides = array<i32>} : memref<2x12x256xf32, #tpu.memory_space<vmem>>, vector<1x12x256xf32>,
    %181 = vector.extract_strided_slice %176 {offsets = [0, 256], sizes = [12, 256], strides = [1, 1]} : vector<12x512xf32> to vector<12x256xf32>
    %c1_124 = arith.constant 1 : index
    %c0_125 = arith.constant 0 : index
    %c0_126 = arith.constant 0 : index
    %182 = vector.load %arg5[%c1_124, %c0_125, %c0_126] : memref<2x12x256xf32, #tpu.memory_space<vmem>>, vector<1x12x256xf32>
    %183 = vector.shape_cast %182 : vector<1x12x256xf32> to vector<12x256xf32>
    %184 = vector.shape_cast %181 : vector<12x256xf32> to vector<1x12x256xf32>
    tpu.vector_store %arg5[%c1_124, %c0_125, %c0_126], %184 {strides = array<i32>} : memref<2x12x256xf32, #tpu.memory_space<vmem>>, vector<1x12x256xf32>,
    return
  }
  func.func @transform_0(%arg0: i32) -> (i32, i32, i32) {
    %c0_i32 = arith.constant 0 : i32
    %c0_i32_0 = arith.constant 0 : i32
    %c0_i32_1 = arith.constant 0 : i32
    return %arg0, %c0_i32, %c0_i32_0 : i32, i32, i32
  }
  func.func @transform_1(%arg0: i32) -> (i32, i32) {
    %c0_i32 = arith.constant 0 : i32
    %c0_i32_0 = arith.constant 0 : i32
    %c0_i32_1 = arith.constant 0 : i32
    return %c0_i32, %c0_i32_0 : i32, i32
  }
  func.func @transform_2(%arg0: i32) -> (i32, i32) {
    %c0_i32 = arith.constant 0 : i32
    %c0_i32_0 = arith.constant 0 : i32
    %c0_i32_1 = arith.constant 0 : i32
    return %c0_i32, %c0_i32_0 : i32, i32
  }
  func.func @transform_3(%arg0: i32) -> (i32, i32) {
    %c0_i32 = arith.constant 0 : i32
    %c0_i32_0 = arith.constant 0 : i32
    %c0_i32_1 = arith.constant 0 : i32
    return %c0_i32, %c0_i32_0 : i32, i32
  }
  func.func @transform_4(%arg0: i32) -> (i32, i32, i32) {
    %c0_i32 = arith.constant 0 : i32
    %c0_i32_0 = arith.constant 0 : i32
    %c0_i32_1 = arith.constant 0 : i32
    return %arg0, %c0_i32, %c0_i32_0 : i32, i32, i32
  }
}

</mosaic_0001>

<llo_original>
// kernel: cab_forward.1
$region0: #{cab_forward.1}
  #allocation0 [shape = 'u32[]', space=smem, size = 0x4, offset = 0x4, fixed_abs, tag = 'smem constant byte address 0x4 - core index']
  #allocation1 [shape = 'u32[72,128]{1,0:T(1,128)}', space=vmem, size = 0x9000, scoped, tag = 'internal scratch']
  #allocation2 [shape = 'f32[152,512]{1,0:T(8,128)}', space=vmem, size = 0x4c000, scoped, tag = 'scratch operand']
  #allocation3 [shape = 'f32[80,512]{1,0:T(8,128)}', space=vmem, size = 0x28000, scoped, tag = 'scratch operand']
  %s0 = inlined_call_operand.vmem [shape: f32[2,12,256], index: 0, kind: input, shape index: {}]
  %s1 = inlined_call_operand.vmem [shape: f32[9,256], index: 1, kind: input, shape index: {}]
  %s2 = inlined_call_operand.vmem [shape: f32[4,152], index: 2, kind: input, shape index: {}]
  %s3 = inlined_call_operand.vmem [shape: f32[12,80], index: 3, kind: input, shape index: {}]
  %s4 = inlined_call_operand.vmem [shape: f32[2,12,256], index: 4, kind: output, shape index: {}]
  %s5 = sld [smem:[#allocation0]]
  $region26: #{cab_forward.1} parent=0
    _
  %s7 = ssub.s32 1, %s5
  %s8 = scalar_select 0, %s7, %s5
  // Predicated region
  $region2: #{cab_forward.1} parent=0 // pred_check
    _
  $region3: #{cab_forward.1} parent=0 // pred_check_branch
    %10 = sbr.rel (0) target = $region5
  $region4: #{cab_forward.1} parent=0 // pred_region
    _
  $region5: #{cab_forward.1} parent=0 // pred_fallthru
    _
  // Predicated region
  $region6: #{cab_forward.1} parent=0 // pred_check
    _
  $region7: #{cab_forward.1} parent=0 // pred_check_branch
    %12 = sbr.rel (0) target = $region9
  $region8: #{cab_forward.1} parent=0 // pred_region
    _
  $region9: #{cab_forward.1} parent=0 // pred_fallthru
    _
  // Predicated region
  $region10: #{cab_forward.1} parent=0 // pred_check
    _
  $region11: #{cab_forward.1} parent=0 // pred_check_branch
    %14 = sbr.rel (0) target = $region13
  $region12: #{cab_forward.1} parent=0 // pred_region
    _
  $region13: #{cab_forward.1} parent=0 // pred_fallthru
    _
  // Predicated region
  $region14: #{cab_forward.1} parent=0 // pred_check
    _
  $region15: #{cab_forward.1} parent=0 // pred_check_branch
    %16 = sbr.rel (0) target = $region17
  $region16: #{cab_forward.1} parent=0 // pred_region
    _
  $region17: #{cab_forward.1} parent=0 // pred_fallthru
    _
  %17 = vst [vmem:[#allocation2] sm:$0xff] 0.0
  %18 = vst [vmem:[#allocation2 + $0x8] sm:$0xff] 0.0
  %19 = vst [vmem:[#allocation2 + $0x10] sm:$0xff] 0.0
  %20 = vst [vmem:[#allocation2 + $0x18] sm:$0xff] 0.0
  %21 = vst [vmem:[#allocation2 + $0x20] sm:$0xff] 0.0
  %22 = vst [vmem:[#allocation2 + $0x28] sm:$0xff] 0.0
  %23 = vst [vmem:[#allocation2 + $0x30] sm:$0xff] 0.0
  %24 = vst [vmem:[#allocation2 + $0x38] sm:$0xff] 0.0
  %25 = vst [vmem:[#allocation2 + $0x40] sm:$0xff] 0.0
  %26 = vst [vmem:[#allocation2 + $0x48] sm:$0xff] 0.0
  %27 = vst [vmem:[#allocation2 + $0x50] sm:$0xff] 0.0
  %28 = vst [vmem:[#allocation2 + $0x58] sm:$0xff] 0.0
  %29 = vst [vmem:[#allocation2 + $0x60] sm:$0xff] 0.0
  %30 = vst [vmem:[#allocation2 + $0x68] sm:$0xff] 0.0
  %31 = vst [vmem:[#allocation2 + $0x70] sm:$0xff] 0.0
  %32 = vst [vmem:[#allocation2 + $0x78] sm:$0xff] 0.0
  %33 = vst [vmem:[#allocation2 + $0x80] sm:$0xff] 0.0
  %34 = vst [vmem:[#allocation2 + $0x88] sm:$0xff] 0.0
  %35 = vst [vmem:[#allocation2 + $0x90] sm:$0xff] 0.0
  %36 = vst [vmem:[#allocation2 + $0x98] sm:$0xff] 0.0
  %37 = vst [vmem:[#allocation2 + $0xa0] sm:$0xff] 0.0
  %38 = vst [vmem:[#allocation2 + $0xa8] sm:$0xff] 0.0
  %39 = vst [vmem:[#allocation2 + $0xb0] sm:$0xff] 0.0
  %40 = vst [vmem:[#allocation2 + $0xb8] sm:$0xff] 0.0
  %41 = vst [vmem:[#allocation2 + $0xc0] sm:$0xff] 0.0
  %42 = vst [vmem:[#allocation2 + $0xc8] sm:$0xff] 0.0
  %43 = vst [vmem:[#allocation2 + $0xd0] sm:$0xff] 0.0
  %44 = vst [vmem:[#allocation2 + $0xd8] sm:$0xff] 0.0
  %45 = vst [vmem:[#allocation2 + $0xe0] sm:$0xff] 0.0
  %46 = vst [vmem:[#allocation2 + $0xe8] sm:$0xff] 0.0
  %47 = vst [vmem:[#allocation2 + $0xf0] sm:$0xff] 0.0
  %48 = vst [vmem:[#allocation2 + $0xf8] sm:$0xff] 0.0
  %49 = vst [vmem:[#allocation2 + $0x100] sm:$0xff] 0.0
  %50 = vst [vmem:[#allocation2 + $0x108] sm:$0xff] 0.0
  %51 = vst [vmem:[#allocation2 + $0x110] sm:$0xff] 0.0
  %52 = vst [vmem:[#allocation2 + $0x118] sm:$0xff] 0.0
  %53 = vst [vmem:[#allocation2 + $0x120] sm:$0xff] 0.0
  %54 = vst [vmem:[#allocation2 + $0x128] sm:$0xff] 0.0
  %55 = vst [vmem:[#allocation2 + $0x130] sm:$0xff] 0.0
  %56 = vst [vmem:[#allocation2 + $0x138] sm:$0xff] 0.0
  %57 = vst [vmem:[#allocation2 + $0x140] sm:$0xff] 0.0
  %58 = vst [vmem:[#allocation2 + $0x148] sm:$0xff] 0.0
  %59 = vst [vmem:[#allocation2 + $0x150] sm:$0xff] 0.0
  %60 = vst [vmem:[#allocation2 + $0x158] sm:$0xff] 0.0
  %61 = vst [vmem:[#allocation2 + $0x160] sm:$0xff] 0.0
  %62 = vst [vmem:[#allocation2 + $0x168] sm:$0xff] 0.0
  %63 = vst [vmem:[#allocation2 + $0x170] sm:$0xff] 0.0
  %64 = vst [vmem:[#allocation2 + $0x178] sm:$0xff] 0.0
  %65 = vst [vmem:[#allocation2 + $0x180] sm:$0xff] 0.0
  %66 = vst [vmem:[#allocation2 + $0x188] sm:$0xff] 0.0
  %67 = vst [vmem:[#allocation2 + $0x190] sm:$0xff] 0.0
  %68 = vst [vmem:[#allocation2 + $0x198] sm:$0xff] 0.0
  %69 = vst [vmem:[#allocation2 + $0x1a0] sm:$0xff] 0.0
  %70 = vst [vmem:[#allocation2 + $0x1a8] sm:$0xff] 0.0
  %71 = vst [vmem:[#allocation2 + $0x1b0] sm:$0xff] 0.0
  %72 = vst [vmem:[#allocation2 + $0x1b8] sm:$0xff] 0.0
  %73 = vst [vmem:[#allocation2 + $0x1c0] sm:$0xff] 0.0
  %74 = vst [vmem:[#allocation2 + $0x1c8] sm:$0xff] 0.0
  %75 = vst [vmem:[#allocation2 + $0x1d0] sm:$0xff] 0.0
  %76 = vst [vmem:[#allocation2 + $0x1d8] sm:$0xff] 0.0
  %77 = vst [vmem:[#allocation2 + $0x1e0] sm:$0xff] 0.0
  %78 = vst [vmem:[#allocation2 + $0x1e8] sm:$0xff] 0.0
  %79 = vst [vmem:[#allocation2 + $0x1f0] sm:$0xff] 0.0
  %80 = vst [vmem:[#allocation2 + $0x1f8] sm:$0xff] 0.0
  %81 = vst [vmem:[#allocation2 + $0x200] sm:$0xff] 0.0
  %82 = vst [vmem:[#allocation2 + $0x208] sm:$0xff] 0.0
  %83 = vst [vmem:[#allocation2 + $0x210] sm:$0xff] 0.0
  %84 = vst [vmem:[#allocation2 + $0x218] sm:$0xff] 0.0
  %85 = vst [vmem:[#allocation2 + $0x220] sm:$0xff] 0.0
  %86 = vst [vmem:[#allocation2 + $0x228] sm:$0xff] 0.0
  %87 = vst [vmem:[#allocation2 + $0x230] sm:$0xff] 0.0
  %88 = vst [vmem:[#allocation2 + $0x238] sm:$0xff] 0.0
  %89 = vst [vmem:[#allocation2 + $0x240] sm:$0xff] 0.0
  %90 = vst [vmem:[#allocation2 + $0x248] sm:$0xff] 0.0
  %91 = vst [vmem:[#allocation2 + $0x250] sm:$0xff] 0.0
  %92 = vst [vmem:[#allocation2 + $0x258] sm:$0xff] 0.0
  %93 = vst [vmem:[#allocation3] sm:$0xff] 0.0
  %94 = vst [vmem:[#allocation3 + $0x8] sm:$0xff] 0.0
  %95 = vst [vmem:[#allocation3 + $0x10] sm:$0xff] 0.0
  %96 = vst [vmem:[#allocation3 + $0x18] sm:$0xff] 0.0
  %97 = vst [vmem:[#allocation3 + $0x20] sm:$0xff] 0.0
  %98 = vst [vmem:[#allocation3 + $0x28] sm:$0xff] 0.0
  %99 = vst [vmem:[#allocation3 + $0x30] sm:$0xff] 0.0
  %100 = vst [vmem:[#allocation3 + $0x38] sm:$0xff] 0.0
  %101 = vst [vmem:[#allocation3 + $0x40] sm:$0xff] 0.0
  %102 = vst [vmem:[#allocation3 + $0x48] sm:$0xff] 0.0
  %103 = vst [vmem:[#allocation3 + $0x50] sm:$0xff] 0.0
  %104 = vst [vmem:[#allocation3 + $0x58] sm:$0xff] 0.0
  %105 = vst [vmem:[#allocation3 + $0x60] sm:$0xff] 0.0
  %106 = vst [vmem:[#allocation3 + $0x68] sm:$0xff] 0.0
  %107 = vst [vmem:[#allocation3 + $0x70] sm:$0xff] 0.0
  %108 = vst [vmem:[#allocation3 + $0x78] sm:$0xff] 0.0
  %109 = vst [vmem:[#allocation3 + $0x80] sm:$0xff] 0.0
  %110 = vst [vmem:[#allocation3 + $0x88] sm:$0xff] 0.0
  %111 = vst [vmem:[#allocation3 + $0x90] sm:$0xff] 0.0
  %112 = vst [vmem:[#allocation3 + $0x98] sm:$0xff] 0.0
  %113 = vst [vmem:[#allocation3 + $0xa0] sm:$0xff] 0.0
  %114 = vst [vmem:[#allocation3 + $0xa8] sm:$0xff] 0.0
  %115 = vst [vmem:[#allocation3 + $0xb0] sm:$0xff] 0.0
  %116 = vst [vmem:[#allocation3 + $0xb8] sm:$0xff] 0.0
  %117 = vst [vmem:[#allocation3 + $0xc0] sm:$0xff] 0.0
  %118 = vst [vmem:[#allocation3 + $0xc8] sm:$0xff] 0.0
  %119 = vst [vmem:[#allocation3 + $0xd0] sm:$0xff] 0.0
  %120 = vst [vmem:[#allocation3 + $0xd8] sm:$0xff] 0.0
  %121 = vst [vmem:[#allocation3 + $0xe0] sm:$0xff] 0.0
  %122 = vst [vmem:[#allocation3 + $0xe8] sm:$0xff] 0.0
  %123 = vst [vmem:[#allocation3 + $0xf0] sm:$0xff] 0.0
  %124 = vst [vmem:[#allocation3 + $0xf8] sm:$0xff] 0.0
  %125 = vst [vmem:[#allocation3 + $0x100] sm:$0xff] 0.0
  %126 = vst [vmem:[#allocation3 + $0x108] sm:$0xff] 0.0
  %127 = vst [vmem:[#allocation3 + $0x110] sm:$0xff] 0.0
  %128 = vst [vmem:[#allocation3 + $0x118] sm:$0xff] 0.0
  %129 = vst [vmem:[#allocation3 + $0x120] sm:$0xff] 0.0
  %130 = vst [vmem:[#allocation3 + $0x128] sm:$0xff] 0.0
  %131 = vst [vmem:[#allocation3 + $0x130] sm:$0xff] 0.0
  %132 = vst [vmem:[#allocation3 + $0x138] sm:$0xff] 0.0
  %v133 = vlaneseq
  %vm134 = vcmp.ge.s32.totalorder %v133, 0
  %vm135 = vcmp.lt.s32.totalorder %v133, 512
  %vm136 = vmand %vm134, %vm135
  %s137 = scalar_lea.vmem [#allocation2], 576
  %138 = vst.msk [vmem:[%s137] ss:$8 sm:$0xf] %vm136, 1.0
  %139 = vst.msk [vmem:[%s137] ss:$8 sm:$0x0] %vm136, 1.0
  %s140 = scalar_lea.vmem [#allocation3], 288
  %141 = vst.msk [vmem:[%s140] ss:$8 sm:$0xf] %vm136, 1.0
  %142 = vst.msk [vmem:[%s140] ss:$8 sm:$0x0] %vm136, 1.0
  %v143 = vld [vmem:[%s1] ss:$8 sm:$0x3]
  %s144 = scalar_lea.vmem %s1, 1
  %v145 = vld [vmem:[%s144] ss:$8 sm:$0x3]
  %s146 = scalar_lea.vmem %s1, 2
  %v147 = vld [vmem:[%s146] ss:$8 sm:$0x3]
  %s148 = scalar_lea.vmem %s1, 3
  %v149 = vld [vmem:[%s148] ss:$8 sm:$0x3]
  %s150 = scalar_lea.vmem %s1, 4
  %v151 = vld [vmem:[%s150] ss:$8 sm:$0x3]
  %s152 = scalar_lea.vmem %s1, 5
  %v153 = vld [vmem:[%s152] ss:$8 sm:$0x3]
  %s154 = scalar_lea.vmem %s1, 6
  %v155 = vld [vmem:[%s154] ss:$8 sm:$0x3]
  %s156 = scalar_lea.vmem %s1, 7
  %v157 = vld [vmem:[%s156] ss:$8 sm:$0x3]
  %s158 = scalar_lea.vmem %s1, 16
  %v159 = vld [vmem:[%s158] ss:$8 sm:$0x3]
  %v160 = vld [vmem:[%s0] sm:$0xff]
  %v161 = vld [vmem:[%s0 + $0x8] sm:$0xff]
  %v162 = vld [vmem:[%s0 + $0x10] sm:$0xf]
  %v163 = vld [vmem:[%s0 + $0x18] sm:$0xf]
  %164 = vrot.lane.b32.xlu0 %v160, 17
  %v165 = vpop.permute.xlu0 %164
  %166 = vrot.lane.b32.xlu0 %v162, 17
  %v167 = vpop.permute.xlu0 %166
  %168 = vrot.lane.b32.xlu0 %v161, 17
  %v169 = vpop.permute.xlu0 %168
  %170 = vrot.lane.b32.xlu0 %v163, 17
  %v171 = vpop.permute.xlu0 %170
  %v172 = vlaneseq
  %v173 = vand.u32 %v172, 127
  %vm174 = vcmp.lt.s32.totalorder %v173, 17
  %v175 = vsel %vm174, %v165, %v169
  %v176 = vsel %vm174, %v167, %v171
  %v177 = vsel %vm174, %v169, %v165
  %v178 = vsel %vm174, %v171, %v167
  %v180 = vperm.slane %v143, 0
  %v181 = vperm.slane %v143, 1
  %v184 = vmul.f32 %v177, %v180
  %v185 = vmul.f32 %v175, %v181
  %v186 = vmul.f32 %v178, %v180
  %v187 = vmul.f32 %v176, %v181
  %188 = vst [vmem:[#allocation2] sm:$0xff] %v184
  %189 = vst [vmem:[#allocation2 + $0x8] sm:$0xff] %v185
  %190 = vst [vmem:[#allocation2 + $0x20] sm:$0xf] %v186
  %191 = vst [vmem:[#allocation2 + $0x28] sm:$0xf] %v187
  %192 = vrot.lane.b32.xlu0 %v160, 16
  %v193 = vpop.permute.xlu0 %192
  %194 = vrot.lane.b32.xlu0 %v162, 16
  %v195 = vpop.permute.xlu0 %194
  %196 = vrot.lane.b32.xlu0 %v161, 16
  %v197 = vpop.permute.xlu0 %196
  %198 = vrot.lane.b32.xlu0 %v163, 16
  %v199 = vpop.permute.xlu0 %198
  %vm200 = vcmp.lt.s32.totalorder %v173, 16
  %v201 = vsel %vm200, %v193, %v197
  %v202 = vsel %vm200, %v195, %v199
  %v203 = vsel %vm200, %v197, %v193
  %v204 = vsel %vm200, %v199, %v195
  %v206 = vperm.slane %v145, 0
  %v207 = vperm.slane %v145, 1
  %v210 = vmul.f32 %v203, %v206
  %v211 = vmul.f32 %v201, %v207
  %v212 = vmul.f32 %v204, %v206
  %v213 = vmul.f32 %v202, %v207
  %214 = vst [vmem:[#allocation2 + $0x40] sm:$0xff] %v210
  %215 = vst [vmem:[#allocation2 + $0x48] sm:$0xff] %v211
  %216 = vst [vmem:[#allocation2 + $0x60] sm:$0xf] %v212
  %217 = vst [vmem:[#allocation2 + $0x68] sm:$0xf] %v213
  %218 = vrot.lane.b32.xlu0 %v160, 15
  %v219 = vpop.permute.xlu0 %218
  %220 = vrot.lane.b32.xlu0 %v162, 15
  %v221 = vpop.permute.xlu0 %220
  %222 = vrot.lane.b32.xlu0 %v161, 15
  %v223 = vpop.permute.xlu0 %222
  %224 = vrot.lane.b32.xlu0 %v163, 15
  %v225 = vpop.permute.xlu0 %224
  %vm226 = vcmp.lt.s32.totalorder %v173, 15
  %v227 = vsel %vm226, %v219, %v223
  %v228 = vsel %vm226, %v221, %v225
  %v229 = vsel %vm226, %v223, %v219
  %v230 = vsel %vm226, %v225, %v221
  %v232 = vperm.slane %v147, 0
  %v233 = vperm.slane %v147, 1
  %v236 = vmul.f32 %v229, %v232
  %v237 = vmul.f32 %v227, %v233
  %v238 = vmul.f32 %v230, %v232
  %v239 = vmul.f32 %v228, %v233
  %240 = vst [vmem:[#allocation2 + $0x80] sm:$0xff] %v236
  %241 = vst [vmem:[#allocation2 + $0x88] sm:$0xff] %v237
  %242 = vst [vmem:[#allocation2 + $0xa0] sm:$0xf] %v238
  %243 = vst [vmem:[#allocation2 + $0xa8] sm:$0xf] %v239
  %244 = vrot.lane.b32.xlu0 %v160, 1
  %v245 = vpop.permute.xlu0 %244
  %246 = vrot.lane.b32.xlu0 %v162, 1
  %v247 = vpop.permute.xlu0 %246
  %248 = vrot.lane.b32.xlu0 %v161, 1
  %v249 = vpop.permute.xlu0 %248
  %250 = vrot.lane.b32.xlu0 %v163, 1
  %v251 = vpop.permute.xlu0 %250
  %vm252 = vcmp.lt.s32.totalorder %v173, 1
  %v253 = vsel %vm252, %v245, %v249
  %v254 = vsel %vm252, %v247, %v251
  %v255 = vsel %vm252, %v249, %v245
  %v256 = vsel %vm252, %v251, %v247
  %v258 = vperm.slane %v149, 0
  %v259 = vperm.slane %v149, 1
  %v262 = vmul.f32 %v255, %v258
  %v263 = vmul.f32 %v253, %v259
  %v264 = vmul.f32 %v256, %v258
  %v265 = vmul.f32 %v254, %v259
  %266 = vst [vmem:[#allocation2 + $0xc0] sm:$0xff] %v262
  %267 = vst [vmem:[#allocation2 + $0xc8] sm:$0xff] %v263
  %268 = vst [vmem:[#allocation2 + $0xe0] sm:$0xf] %v264
  %269 = vst [vmem:[#allocation2 + $0xe8] sm:$0xf] %v265
  %v271 = vperm.slane %v151, 0
  %v272 = vperm.slane %v151, 1
  %v275 = vmul.f32 %v160, %v271
  %v276 = vmul.f32 %v161, %v272
  %v277 = vmul.f32 %v162, %v271
  %v278 = vmul.f32 %v163, %v272
  %279 = vst [vmem:[#allocation2 + $0x100] sm:$0xff] %v275
  %280 = vst [vmem:[#allocation2 + $0x108] sm:$0xff] %v276
  %281 = vst [vmem:[#allocation2 + $0x120] sm:$0xf] %v277
  %282 = vst [vmem:[#allocation2 + $0x128] sm:$0xf] %v278
  %283 = vrot.lane.b32.xlu0 %v160, 127
  %v284 = vpop.permute.xlu0 %283
  %285 = vrot.lane.b32.xlu0 %v162, 127
  %v286 = vpop.permute.xlu0 %285
  %287 = vrot.lane.b32.xlu0 %v161, 127
  %v288 = vpop.permute.xlu0 %287
  %289 = vrot.lane.b32.xlu0 %v163, 127
  %v290 = vpop.permute.xlu0 %289
  %vm291 = vcmp.lt.s32.totalorder %v173, 127
  %v292 = vsel %vm291, %v284, %v288
  %v293 = vsel %vm291, %v286, %v290
  %v294 = vsel %vm291, %v288, %v284
  %v295 = vsel %vm291, %v290, %v286
  %v297 = vperm.slane %v153, 0
  %v298 = vperm.slane %v153, 1
  %v301 = vmul.f32 %v292, %v297
  %v302 = vmul.f32 %v294, %v298
  %v303 = vmul.f32 %v293, %v297
  %v304 = vmul.f32 %v295, %v298
  %305 = vst [vmem:[#allocation2 + $0x140] sm:$0xff] %v301
  %306 = vst [vmem:[#allocation2 + $0x148] sm:$0xff] %v302
  %307 = vst [vmem:[#allocation2 + $0x160] sm:$0xf] %v303
  %308 = vst [vmem:[#allocation2 + $0x168] sm:$0xf] %v304
  %309 = vrot.lane.b32.xlu0 %v160, 113
  %v310 = vpop.permute.xlu0 %309
  %311 = vrot.lane.b32.xlu0 %v162, 113
  %v312 = vpop.permute.xlu0 %311
  %313 = vrot.lane.b32.xlu0 %v161, 113
  %v314 = vpop.permute.xlu0 %313
  %315 = vrot.lane.b32.xlu0 %v163, 113
  %v316 = vpop.permute.xlu0 %315
  %vm317 = vcmp.lt.s32.totalorder %v173, 113
  %v318 = vsel %vm317, %v310, %v314
  %v319 = vsel %vm317, %v312, %v316
  %v320 = vsel %vm317, %v314, %v310
  %v321 = vsel %vm317, %v316, %v312
  %v323 = vperm.slane %v155, 0
  %v324 = vperm.slane %v155, 1
  %v327 = vmul.f32 %v318, %v323
  %v328 = vmul.f32 %v320, %v324
  %v329 = vmul.f32 %v319, %v323
  %v330 = vmul.f32 %v321, %v324
  %331 = vst [vmem:[#allocation2 + $0x180] sm:$0xff] %v327
  %332 = vst [vmem:[#allocation2 + $0x188] sm:$0xff] %v328
  %333 = vst [vmem:[#allocation2 + $0x1a0] sm:$0xf] %v329
  %334 = vst [vmem:[#allocation2 + $0x1a8] sm:$0xf] %v330
  %335 = vrot.lane.b32.xlu0 %v160, 112
  %v336 = vpop.permute.xlu0 %335
  %337 = vrot.lane.b32.xlu0 %v162, 112
  %v338 = vpop.permute.xlu0 %337
  %339 = vrot.lane.b32.xlu0 %v161, 112
  %v340 = vpop.permute.xlu0 %339
  %341 = vrot.lane.b32.xlu0 %v163, 112
  %v342 = vpop.permute.xlu0 %341
  %vm343 = vcmp.lt.s32.totalorder %v173, 112
  %v344 = vsel %vm343, %v336, %v340
  %v345 = vsel %vm343, %v338, %v342
  %v346 = vsel %vm343, %v340, %v336
  %v347 = vsel %vm343, %v342, %v338
  %v349 = vperm.slane %v157, 0
  %v350 = vperm.slane %v157, 1
  %v353 = vmul.f32 %v344, %v349
  %v354 = vmul.f32 %v346, %v350
  %v355 = vmul.f32 %v345, %v349
  %v356 = vmul.f32 %v347, %v350
  %357 = vst [vmem:[#allocation2 + $0x1c0] sm:$0xff] %v353
  %358 = vst [vmem:[#allocation2 + $0x1c8] sm:$0xff] %v354
  %359 = vst [vmem:[#allocation2 + $0x1e0] sm:$0xf] %v355
  %360 = vst [vmem:[#allocation2 + $0x1e8] sm:$0xf] %v356
  %361 = vrot.lane.b32.xlu0 %v160, 111
  %v362 = vpop.permute.xlu0 %361
  %363 = vrot.lane.b32.xlu0 %v162, 111
  %v364 = vpop.permute.xlu0 %363
  %365 = vrot.lane.b32.xlu0 %v161, 111
  %v366 = vpop.permute.xlu0 %365
  %367 = vrot.lane.b32.xlu0 %v163, 111
  %v368 = vpop.permute.xlu0 %367
  %vm369 = vcmp.lt.s32.totalorder %v173, 111
  %v370 = vsel %vm369, %v362, %v366
  %v371 = vsel %vm369, %v364, %v368
  %v372 = vsel %vm369, %v366, %v362
  %v373 = vsel %vm369, %v368, %v364
  %v375 = vperm.slane %v159, 0
  %v376 = vperm.slane %v159, 1
  %v379 = vmul.f32 %v370, %v375
  %v380 = vmul.f32 %v372, %v376
  %v381 = vmul.f32 %v371, %v375
  %v382 = vmul.f32 %v373, %v376
  %383 = vst [vmem:[#allocation2 + $0x200] sm:$0xff] %v379
  %384 = vst [vmem:[#allocation2 + $0x208] sm:$0xff] %v380
  %385 = vst [vmem:[#allocation2 + $0x220] sm:$0xf] %v381
  %386 = vst [vmem:[#allocation2 + $0x228] sm:$0xf] %v382
  %s387 = scalar_lea.vmem %s0, 32
  %v388 = vld [vmem:[%s387] sm:$0xff]
  %v389 = vld [vmem:[%s387 + $0x8] sm:$0xff]
  %v390 = vld [vmem:[%s387 + $0x10] sm:$0xf]
  %v391 = vld [vmem:[%s387 + $0x18] sm:$0xf]
  %392 = vrot.lane.b32.xlu0 %v388, 17
  %v393 = vpop.permute.xlu0 %392
  %394 = vrot.lane.b32.xlu0 %v390, 17
  %v395 = vpop.permute.xlu0 %394
  %396 = vrot.lane.b32.xlu0 %v389, 17
  %v397 = vpop.permute.xlu0 %396
  %398 = vrot.lane.b32.xlu0 %v391, 17
  %v399 = vpop.permute.xlu0 %398
  %v400 = vsel %vm174, %v393, %v397
  %v401 = vsel %vm174, %v395, %v399
  %v402 = vsel %vm174, %v397, %v393
  %v403 = vsel %vm174, %v399, %v395
  %v404 = vmul.f32 %v402, %v180
  %v405 = vmul.f32 %v400, %v181
  %v406 = vmul.f32 %v403, %v180
  %v407 = vmul.f32 %v401, %v181
  %408 = vst [vmem:[#allocation2 + $0x10] sm:$0xff] %v404
  %409 = vst [vmem:[#allocation2 + $0x18] sm:$0xff] %v405
  %410 = vst [vmem:[#allocation2 + $0x30] sm:$0xf] %v406
  %411 = vst [vmem:[#allocation2 + $0x38] sm:$0xf] %v407
  %412 = vrot.lane.b32.xlu0 %v388, 16
  %v413 = vpop.permute.xlu0 %412
  %414 = vrot.lane.b32.xlu0 %v390, 16
  %v415 = vpop.permute.xlu0 %414
  %416 = vrot.lane.b32.xlu0 %v389, 16
  %v417 = vpop.permute.xlu0 %416
  %418 = vrot.lane.b32.xlu0 %v391, 16
  %v419 = vpop.permute.xlu0 %418
  %v420 = vsel %vm200, %v413, %v417
  %v421 = vsel %vm200, %v415, %v419
  %v422 = vsel %vm200, %v417, %v413
  %v423 = vsel %vm200, %v419, %v415
  %v424 = vmul.f32 %v422, %v206
  %v425 = vmul.f32 %v420, %v207
  %v426 = vmul.f32 %v423, %v206
  %v427 = vmul.f32 %v421, %v207
  %428 = vst [vmem:[#allocation2 + $0x50] sm:$0xff] %v424
  %429 = vst [vmem:[#allocation2 + $0x58] sm:$0xff] %v425
  %430 = vst [vmem:[#allocation2 + $0x70] sm:$0xf] %v426
  %431 = vst [vmem:[#allocation2 + $0x78] sm:$0xf] %v427
  %432 = vrot.lane.b32.xlu0 %v388, 15
  %v433 = vpop.permute.xlu0 %432
  %434 = vrot.lane.b32.xlu0 %v390, 15
  %v435 = vpop.permute.xlu0 %434
  %436 = vrot.lane.b32.xlu0 %v389, 15
  %v437 = vpop.permute.xlu0 %436
  %438 = vrot.lane.b32.xlu0 %v391, 15
  %v439 = vpop.permute.xlu0 %438
  %v440 = vsel %vm226, %v433, %v437
  %v441 = vsel %vm226, %v435, %v439
  %v442 = vsel %vm226, %v437, %v433
  %v443 = vsel %vm226, %v439, %v435
  %v444 = vmul.f32 %v442, %v232
  %v445 = vmul.f32 %v440, %v233
  %v446 = vmul.f32 %v443, %v232
  %v447 = vmul.f32 %v441, %v233
  %448 = vst [vmem:[#allocation2 + $0x90] sm:$0xff] %v444
  %449 = vst [vmem:[#allocation2 + $0x98] sm:$0xff] %v445
  %450 = vst [vmem:[#allocation2 + $0xb0] sm:$0xf] %v446
  %451 = vst [vmem:[#allocation2 + $0xb8] sm:$0xf] %v447
  %452 = vrot.lane.b32.xlu0 %v388, 1
  %v453 = vpop.permute.xlu0 %452
  %454 = vrot.lane.b32.xlu0 %v390, 1
  %v455 = vpop.permute.xlu0 %454
  %456 = vrot.lane.b32.xlu0 %v389, 1
  %v457 = vpop.permute.xlu0 %456
  %458 = vrot.lane.b32.xlu0 %v391, 1
  %v459 = vpop.permute.xlu0 %458
  %v460 = vsel %vm252, %v453, %v457
  %v461 = vsel %vm252, %v455, %v459
  %v462 = vsel %vm252, %v457, %v453
  %v463 = vsel %vm252, %v459, %v455
  %v464 = vmul.f32 %v462, %v258
  %v465 = vmul.f32 %v460, %v259
  %v466 = vmul.f32 %v463, %v258
  %v467 = vmul.f32 %v461, %v259
  %468 = vst [vmem:[#allocation2 + $0xd0] sm:$0xff] %v464
  %469 = vst [vmem:[#allocation2 + $0xd8] sm:$0xff] %v465
  %470 = vst [vmem:[#allocation2 + $0xf0] sm:$0xf] %v466
  %471 = vst [vmem:[#allocation2 + $0xf8] sm:$0xf] %v467
  %v472 = vmul.f32 %v388, %v271
  %v473 = vmul.f32 %v389, %v272
  %v474 = vmul.f32 %v390, %v271
  %v475 = vmul.f32 %v391, %v272
  %476 = vst [vmem:[#allocation2 + $0x110] sm:$0xff] %v472
  %477 = vst [vmem:[#allocation2 + $0x118] sm:$0xff] %v473
  %478 = vst [vmem:[#allocation2 + $0x130] sm:$0xf] %v474
  %479 = vst [vmem:[#allocation2 + $0x138] sm:$0xf] %v475
  %480 = vrot.lane.b32.xlu0 %v388, 127
  %v481 = vpop.permute.xlu0 %480
  %482 = vrot.lane.b32.xlu0 %v390, 127
  %v483 = vpop.permute.xlu0 %482
  %484 = vrot.lane.b32.xlu0 %v389, 127
  %v485 = vpop.permute.xlu0 %484
  %486 = vrot.lane.b32.xlu0 %v391, 127
  %v487 = vpop.permute.xlu0 %486
  %v488 = vsel %vm291, %v481, %v485
  %v489 = vsel %vm291, %v483, %v487
  %v490 = vsel %vm291, %v485, %v481
  %v491 = vsel %vm291, %v487, %v483
  %v492 = vmul.f32 %v488, %v297
  %v493 = vmul.f32 %v490, %v298
  %v494 = vmul.f32 %v489, %v297
  %v495 = vmul.f32 %v491, %v298
  %496 = vst [vmem:[#allocation2 + $0x150] sm:$0xff] %v492
  %497 = vst [vmem:[#allocation2 + $0x158] sm:$0xff] %v493
  %498 = vst [vmem:[#allocation2 + $0x170] sm:$0xf] %v494
  %499 = vst [vmem:[#allocation2 + $0x178] sm:$0xf] %v495
  %500 = vrot.lane.b32.xlu0 %v388, 113
  %v501 = vpop.permute.xlu0 %500
  %502 = vrot.lane.b32.xlu0 %v390, 113
  %v503 = vpop.permute.xlu0 %502
  %504 = vrot.lane.b32.xlu0 %v389, 113
  %v505 = vpop.permute.xlu0 %504
  %506 = vrot.lane.b32.xlu0 %v391, 113
  %v507 = vpop.permute.xlu0 %506
  %v508 = vsel %vm317, %v501, %v505
  %v509 = vsel %vm317, %v503, %v507
  %v510 = vsel %vm317, %v505, %v501
  %v511 = vsel %vm317, %v507, %v503
  %v512 = vmul.f32 %v508, %v323
  %v513 = vmul.f32 %v510, %v324
  %v514 = vmul.f32 %v509, %v323
  %v515 = vmul.f32 %v511, %v324
  %516 = vst [vmem:[#allocation2 + $0x190] sm:$0xff] %v512
  %517 = vst [vmem:[#allocation2 + $0x198] sm:$0xff] %v513
  %518 = vst [vmem:[#allocation2 + $0x1b0] sm:$0xf] %v514
  %519 = vst [vmem:[#allocation2 + $0x1b8] sm:$0xf] %v515
  %520 = vrot.lane.b32.xlu0 %v388, 112
  %v521 = vpop.permute.xlu0 %520
  %522 = vrot.lane.b32.xlu0 %v390, 112
  %v523 = vpop.permute.xlu0 %522
  %524 = vrot.lane.b32.xlu0 %v389, 112
  %v525 = vpop.permute.xlu0 %524
  %526 = vrot.lane.b32.xlu0 %v391, 112
  %v527 = vpop.permute.xlu0 %526
  %v528 = vsel %vm343, %v521, %v525
  %v529 = vsel %vm343, %v523, %v527
  %v530 = vsel %vm343, %v525, %v521
  %v531 = vsel %vm343, %v527, %v523
  %v532 = vmul.f32 %v528, %v349
  %v533 = vmul.f32 %v530, %v350
  %v534 = vmul.f32 %v529, %v349
  %v535 = vmul.f32 %v531, %v350
  %536 = vst [vmem:[#allocation2 + $0x1d0] sm:$0xff] %v532
  %537 = vst [vmem:[#allocation2 + $0x1d8] sm:$0xff] %v533
  %538 = vst [vmem:[#allocation2 + $0x1f0] sm:$0xf] %v534
  %539 = vst [vmem:[#allocation2 + $0x1f8] sm:$0xf] %v535
  %540 = vrot.lane.b32.xlu0 %v388, 111
  %v541 = vpop.permute.xlu0 %540
  %542 = vrot.lane.b32.xlu0 %v390, 111
  %v543 = vpop.permute.xlu0 %542
  %544 = vrot.lane.b32.xlu0 %v389, 111
  %v545 = vpop.permute.xlu0 %544
  %546 = vrot.lane.b32.xlu0 %v391, 111
  %v547 = vpop.permute.xlu0 %546
  %v548 = vsel %vm369, %v541, %v545
  %v549 = vsel %vm369, %v543, %v547
  %v550 = vsel %vm369, %v545, %v541
  %v551 = vsel %vm369, %v547, %v543
  %v552 = vmul.f32 %v548, %v375
  %v553 = vmul.f32 %v550, %v376
  %v554 = vmul.f32 %v549, %v375
  %v555 = vmul.f32 %v551, %v376
  %556 = vst [vmem:[#allocation2 + $0x210] sm:$0xff] %v552
  %557 = vst [vmem:[#allocation2 + $0x218] sm:$0xff] %v553
  %558 = vst [vmem:[#allocation2 + $0x230] sm:$0xf] %v554
  %559 = vst [vmem:[#allocation2 + $0x238] sm:$0xf] %v555
  %v560 = vld [vmem:[%s2] sm:$0xff]
  %v561 = vld [vmem:[#allocation2] sm:$0xff]
  %v562 = vld [vmem:[#allocation2 + $0x8] sm:$0xff]
  %v563 = vld [vmem:[#allocation2 + $0x10] sm:$0xff]
  %v564 = vld [vmem:[#allocation2 + $0x18] sm:$0xff]
  %v565 = vld [vmem:[#allocation2 + $0x20] sm:$0xff]
  %v566 = vld [vmem:[#allocation2 + $0x28] sm:$0xff]
  %v567 = vld [vmem:[#allocation2 + $0x30] sm:$0xff]
  %v568 = vld [vmem:[#allocation2 + $0x38] sm:$0xff]
  %v569 = vld [vmem:[#allocation2 + $0x40] sm:$0xff]
  %v570 = vld [vmem:[#allocation2 + $0x48] sm:$0xff]
  %v571 = vld [vmem:[#allocation2 + $0x50] sm:$0xff]
  %v572 = vld [vmem:[#allocation2 + $0x58] sm:$0xff]
  %v573 = vld [vmem:[#allocation2 + $0x60] sm:$0xff]
  %v574 = vld [vmem:[#allocation2 + $0x68] sm:$0xff]
  %v575 = vld [vmem:[#allocation2 + $0x70] sm:$0xff]
  %v576 = vld [vmem:[#allocation2 + $0x78] sm:$0xff]
  %v577 = vld [vmem:[#allocation2 + $0x80] sm:$0xff]
  %v578 = vld [vmem:[#allocation2 + $0x88] sm:$0xff]
  %v579 = vld [vmem:[#allocation2 + $0x90] sm:$0xff]
  %v580 = vld [vmem:[#allocation2 + $0x98] sm:$0xff]
  %v581 = vld [vmem:[#allocation2 + $0xa0] sm:$0xff]
  %v582 = vld [vmem:[#allocation2 + $0xa8] sm:$0xff]
  %v583 = vld [vmem:[#allocation2 + $0xb0] sm:$0xff]
  %v584 = vld [vmem:[#allocation2 + $0xb8] sm:$0xff]
  %v585 = vld [vmem:[#allocation2 + $0xc0] sm:$0xff]
  %v586 = vld [vmem:[#allocation2 + $0xc8] sm:$0xff]
  %v587 = vld [vmem:[#allocation2 + $0xd0] sm:$0xff]
  %v588 = vld [vmem:[#allocation2 + $0xd8] sm:$0xff]
  %v589 = vld [vmem:[#allocation2 + $0xe0] sm:$0xff]
  %v590 = vld [vmem:[#allocation2 + $0xe8] sm:$0xff]
  %v591 = vld [vmem:[#allocation2 + $0xf0] sm:$0xff]
  %v592 = vld [vmem:[#allocation2 + $0xf8] sm:$0xff]
  %v593 = vld [vmem:[#allocation2 + $0x100] sm:$0xff]
  %v594 = vld [vmem:[#allocation2 + $0x108] sm:$0xff]
  %v595 = vld [vmem:[#allocation2 + $0x110] sm:$0xff]
  %v596 = vld [vmem:[#allocation2 + $0x118] sm:$0xff]
  %v597 = vld [vmem:[#allocation2 + $0x120] sm:$0xff]
  %v598 = vld [vmem:[#allocation2 + $0x128] sm:$0xff]
  %v599 = vld [vmem:[#allocation2 + $0x130] sm:$0xff]
  %v600 = vld [vmem:[#allocation2 + $0x138] sm:$0xff]
  %v601 = vld [vmem:[#allocation2 + $0x140] sm:$0xff]
  %v602 = vld [vmem:[#allocation2 + $0x148] sm:$0xff]
  %v603 = vld [vmem:[#allocation2 + $0x150] sm:$0xff]
  %v604 = vld [vmem:[#allocation2 + $0x158] sm:$0xff]
  %v605 = vld [vmem:[#allocation2 + $0x160] sm:$0xff]
  %v606 = vld [vmem:[#allocation2 + $0x168] sm:$0xff]
  %v607 = vld [vmem:[#allocation2 + $0x170] sm:$0xff]
  %v608 = vld [vmem:[#allocation2 + $0x178] sm:$0xff]
  %v609 = vld [vmem:[#allocation2 + $0x180] sm:$0xff]
  %v610 = vld [vmem:[#allocation2 + $0x188] sm:$0xff]
  %v611 = vld [vmem:[#allocation2 + $0x190] sm:$0xff]
  %v612 = vld [vmem:[#allocation2 + $0x198] sm:$0xff]
  %v613 = vld [vmem:[#allocation2 + $0x1a0] sm:$0xff]
  %v614 = vld [vmem:[#allocation2 + $0x1a8] sm:$0xff]
  %v615 = vld [vmem:[#allocation2 + $0x1b0] sm:$0xff]
  %v616 = vld [vmem:[#allocation2 + $0x1b8] sm:$0xff]
  %v617 = vld [vmem:[#allocation2 + $0x1c0] sm:$0xff]
  %v618 = vld [vmem:[#allocation2 + $0x1c8] sm:$0xff]
  %v619 = vld [vmem:[#allocation2 + $0x1d0] sm:$0xff]
  %v620 = vld [vmem:[#allocation2 + $0x1d8] sm:$0xff]
  %v621 = vld [vmem:[#allocation2 + $0x1e0] sm:$0xff]
  %v622 = vld [vmem:[#allocation2 + $0x1e8] sm:$0xff]
  %v623 = vld [vmem:[#allocation2 + $0x1f0] sm:$0xff]
  %v624 = vld [vmem:[#allocation2 + $0x1f8] sm:$0xff]
  %v625 = vld [vmem:[#allocation2 + $0x200] sm:$0xff]
  %v626 = vld [vmem:[#allocation2 + $0x208] sm:$0xff]
  %v627 = vld [vmem:[#allocation2 + $0x210] sm:$0xff]
  %v628 = vld [vmem:[#allocation2 + $0x218] sm:$0xff]
  %v629 = vld [vmem:[#allocation2 + $0x220] sm:$0xff]
  %v630 = vld [vmem:[#allocation2 + $0x228] sm:$0xff]
  %v631 = vld [vmem:[#allocation2 + $0x230] sm:$0xff]
  %v632 = vld [vmem:[#allocation2 + $0x238] sm:$0xff]
  %v633 = vld [vmem:[#allocation2 + $0x240] sm:$0xff]
  %v634 = vld [vmem:[#allocation2 + $0x248] sm:$0xff]
  %v635 = vld [vmem:[#allocation2 + $0x250] sm:$0xff]
  %v636 = vld [vmem:[#allocation2 + $0x258] sm:$0xff]
  %638 = vst [vmem:[#allocation1] ss:$2 sm:$0xff] %v560
  %v639 = vld.sshfl [vmem:[#allocation1] sm:$0xff pattern:$0x75316420]
  %v640 = vld.sshfl [vmem:[#allocation1 + $0x8] sm:$0xff pattern:$0x75316420]
  %vm642 = vcmask 195584
  %v643 = vsel %vm642, %v640, 0
  %645 = vmatpush.msra.mxu0 %v621
  %646 = vmatpush.msra.mxu0 %v617
  %647 = vmatpush.msra.mxu0 %v613
  %648 = vmatpush.msra.mxu0 %v609
  %649 = vmatpush.msra.mxu0 %v605
  %650 = vmatpush.msra.mxu0 %v601
  %651 = vmatpush.msra.mxu0 %v597
  %652 = vmatpush.msra.mxu0 %v593
  %653 = vmatpush.msra.mxu0 %v589
  %654 = vmatpush.msra.mxu0 %v585
  %655 = vmatpush.msra.mxu0 %v581
  %656 = vmatpush.msra.mxu0 %v577
  %657 = vmatpush.msra.mxu0 %v573
  %658 = vmatpush.msra.mxu0 %v569
  %659 = vmatpush.msra.mxu0 %v565
  %660 = vmatpush.msra.mxu0 %v561
  %661 = vmatmul.f32.gmra.mxu0 %v639
  %v662 = vpop.f32.mrf.mxu0
  %v663 = vadd.f32 0.0, %v662
  %664 = vdwg.mxu0
  %665 = vmatpush.msra.mxu0 0.0
  %666 = vmatpush.msra.mxu0 0.0
  %667 = vmatpush.msra.mxu0 0.0
  %668 = vmatpush.msra.mxu0 0.0
  %669 = vmatpush.msra.mxu0 0.0
  %670 = vmatpush.msra.mxu0 0.0
  %671 = vmatpush.msra.mxu0 0.0
  %672 = vmatpush.msra.mxu0 0.0
  %673 = vmatpush.msra.mxu0 0.0
  %674 = vmatpush.msra.mxu0 0.0
  %675 = vmatpush.msra.mxu0 0.0
  %676 = vmatpush.msra.mxu0 0.0
  %677 = vmatpush.msra.mxu0 0.0
  %678 = vmatpush.msra.mxu0 %v633
  %679 = vmatpush.msra.mxu0 %v629
  %680 = vmatpush.msra.mxu0 %v625
  %681 = vmatmul.f32.gmra.mxu0 %v643
  %v682 = vpop.f32.mrf.mxu0
  %v683 = vadd.f32 %v663, %v682
  %684 = vdwg.mxu0
  %685 = vmatpush.msra.mxu0 %v622
  %686 = vmatpush.msra.mxu0 %v618
  %687 = vmatpush.msra.mxu0 %v614
  %688 = vmatpush.msra.mxu0 %v610
  %689 = vmatpush.msra.mxu0 %v606
  %690 = vmatpush.msra.mxu0 %v602
  %691 = vmatpush.msra.mxu0 %v598
  %692 = vmatpush.msra.mxu0 %v594
  %693 = vmatpush.msra.mxu0 %v590
  %694 = vmatpush.msra.mxu0 %v586
  %695 = vmatpush.msra.mxu0 %v582
  %696 = vmatpush.msra.mxu0 %v578
  %697 = vmatpush.msra.mxu0 %v574
  %698 = vmatpush.msra.mxu0 %v570
  %699 = vmatpush.msra.mxu0 %v566
  %700 = vmatpush.msra.mxu0 %v562
  %701 = vmatmul.f32.gmra.mxu0 %v639
  %v702 = vpop.f32.mrf.mxu0
  %v703 = vadd.f32 0.0, %v702
  %704 = vdwg.mxu0
  %705 = vmatpush.msra.mxu0 0.0
  %706 = vmatpush.msra.mxu0 0.0
  %707 = vmatpush.msra.mxu0 0.0
  %708 = vmatpush.msra.mxu0 0.0
  %709 = vmatpush.msra.mxu0 0.0
  %710 = vmatpush.msra.mxu0 0.0
  %711 = vmatpush.msra.mxu0 0.0
  %712 = vmatpush.msra.mxu0 0.0
  %713 = vmatpush.msra.mxu0 0.0
  %714 = vmatpush.msra.mxu0 0.0
  %715 = vmatpush.msra.mxu0 0.0
  %716 = vmatpush.msra.mxu0 0.0
  %717 = vmatpush.msra.mxu0 0.0
  %718 = vmatpush.msra.mxu0 %v634
  %719 = vmatpush.msra.mxu0 %v630
  %720 = vmatpush.msra.mxu0 %v626
  %721 = vmatmul.f32.gmra.mxu0 %v643
  %v722 = vpop.f32.mrf.mxu0
  %v723 = vadd.f32 %v703, %v722
  %724 = vdwg.mxu0
  %725 = vmatpush.msra.mxu0 %v623
  %726 = vmatpush.msra.mxu0 %v619
  %727 = vmatpush.msra.mxu0 %v615
  %728 = vmatpush.msra.mxu0 %v611
  %729 = vmatpush.msra.mxu0 %v607
  %730 = vmatpush.msra.mxu0 %v603
  %731 = vmatpush.msra.mxu0 %v599
  %732 = vmatpush.msra.mxu0 %v595
  %733 = vmatpush.msra.mxu0 %v591
  %734 = vmatpush.msra.mxu0 %v587
  %735 = vmatpush.msra.mxu0 %v583
  %736 = vmatpush.msra.mxu0 %v579
  %737 = vmatpush.msra.mxu0 %v575
  %738 = vmatpush.msra.mxu0 %v571
  %739 = vmatpush.msra.mxu0 %v567
  %740 = vmatpush.msra.mxu0 %v563
  %741 = vmatmul.f32.gmra.mxu0 %v639
  %v742 = vpop.f32.mrf.mxu0
  %v743 = vadd.f32 0.0, %v742
  %744 = vdwg.mxu0
  %745 = vmatpush.msra.mxu0 0.0
  %746 = vmatpush.msra.mxu0 0.0
  %747 = vmatpush.msra.mxu0 0.0
  %748 = vmatpush.msra.mxu0 0.0
  %749 = vmatpush.msra.mxu0 0.0
  %750 = vmatpush.msra.mxu0 0.0
  %751 = vmatpush.msra.mxu0 0.0
  %752 = vmatpush.msra.mxu0 0.0
  %753 = vmatpush.msra.mxu0 0.0
  %754 = vmatpush.msra.mxu0 0.0
  %755 = vmatpush.msra.mxu0 0.0
  %756 = vmatpush.msra.mxu0 0.0
  %757 = vmatpush.msra.mxu0 0.0
  %758 = vmatpush.msra.mxu0 %v635
  %759 = vmatpush.msra.mxu0 %v631
  %760 = vmatpush.msra.mxu0 %v627
  %761 = vmatmul.f32.gmra.mxu0 %v643
  %v762 = vpop.f32.mrf.mxu0
  %v763 = vadd.f32 %v743, %v762
  %764 = vdwg.mxu0
  %765 = vmatpush.msra.mxu0 %v624
  %766 = vmatpush.msra.mxu0 %v620
  %767 = vmatpush.msra.mxu0 %v616
  %768 = vmatpush.msra.mxu0 %v612
  %769 = vmatpush.msra.mxu0 %v608
  %770 = vmatpush.msra.mxu0 %v604
  %771 = vmatpush.msra.mxu0 %v600
  %772 = vmatpush.msra.mxu0 %v596
  %773 = vmatpush.msra.mxu0 %v592
  %774 = vmatpush.msra.mxu0 %v588
  %775 = vmatpush.msra.mxu0 %v584
  %776 = vmatpush.msra.mxu0 %v580
  %777 = vmatpush.msra.mxu0 %v576
  %778 = vmatpush.msra.mxu0 %v572
  %779 = vmatpush.msra.mxu0 %v568
  %780 = vmatpush.msra.mxu0 %v564
  %781 = vmatmul.f32.gmra.mxu0 %v639
  %v782 = vpop.f32.mrf.mxu0
  %v783 = vadd.f32 0.0, %v782
  %784 = vdwg.mxu0
  %785 = vmatpush.msra.mxu0 0.0
  %786 = vmatpush.msra.mxu0 0.0
  %787 = vmatpush.msra.mxu0 0.0
  %788 = vmatpush.msra.mxu0 0.0
  %789 = vmatpush.msra.mxu0 0.0
  %790 = vmatpush.msra.mxu0 0.0
  %791 = vmatpush.msra.mxu0 0.0
  %792 = vmatpush.msra.mxu0 0.0
  %793 = vmatpush.msra.mxu0 0.0
  %794 = vmatpush.msra.mxu0 0.0
  %795 = vmatpush.msra.mxu0 0.0
  %796 = vmatpush.msra.mxu0 0.0
  %797 = vmatpush.msra.mxu0 0.0
  %798 = vmatpush.msra.mxu0 %v636
  %799 = vmatpush.msra.mxu0 %v632
  %800 = vmatpush.msra.mxu0 %v628
  %801 = vmatmul.f32.gmra.mxu0 %v643
  %v802 = vpop.f32.mrf.mxu0
  %v803 = vadd.f32 %v783, %v802
  %804 = vdwg.mxu0
  %v805 = vmul.f32 %v683, 0.5
  %v806 = vmul.f32 %v723, 0.5
  %v807 = vmul.f32 %v763, 0.5
  %v808 = vmul.f32 %v803, 0.5
  %v809 = vmul.f32 %v683, 0.70710677
  %v810 = vmul.f32 %v723, 0.70710677
  %v811 = vmul.f32 %v763, 0.70710677
  %v812 = vmul.f32 %v803, 0.70710677
  %v813 = vmul.f32 %v809, %v809
  %v814 = vmin.f32 16.0, %v813
  %v815 = vmul.f32 %v814, 2.1237322e-06
  %v816 = vadd.f32 %v815, 0.00028619796
  %v817 = vmul.f32 %v814, %v816
  %v818 = vadd.f32 %v817, 0.0036580483
  %v819 = vmul.f32 %v814, %v818
  %v820 = vadd.f32 %v819, 0.05243302
  %v821 = vmul.f32 %v814, %v820
  %v822 = vadd.f32 %v821, 0.18741608
  %v823 = vmul.f32 %v814, %v822
  %v824 = vadd.f32 %v823, 1.1283791
  %v825 = vmul.f32 %v809, %v824
  %v826 = vmul.f32 %v814, 3.8918573e-05
  %v827 = vadd.f32 %v826, 0.001143296
  %v828 = vmul.f32 %v814, %v827
  %v829 = vadd.f32 %v828, 0.014752088
  %v830 = vmul.f32 %v814, %v829
  %v831 = vadd.f32 %v830, 0.112945676
  %v832 = vmul.f32 %v814, %v831
  %v833 = vadd.f32 %v832, 0.4994258
  %v834 = vmul.f32 %v814, %v833
  %v835 = vadd.f32 %v834, 1.0
  %v836 = vrcp.pop %v835
  %v837 = vmul.f32 %v835, %v836
  %v838 = vsub.f32 1.0, %v837
  %v839 = vmul.f32 %v836, %v838
  %v840 = vadd.f32 %v836, %v839
  %vm841 = vweird.f32 %v835
  %vm842 = vweird.f32 %v836
  %vm843 = vmor %vm841, %vm842
  %v844 = vsel %vm843, %v836, %v840
  %v845 = vand.u32 2147483647, %v835
  %vm846 = vcmp.eq.f32.partialorder %v845, 8.507059e+37
  %v847 = vand.u32 %v835, 2147483648
  %v848 = vor.u32 1.1754944e-38, %v847
  %v849 = vsel %vm846, %v848, %v844
  %v850 = vmul.f32 %v825, %v849
  %v851 = vmin.f32 %v850, 1.0
  %v852 = vmax.f32 %v851, -1.0
  %v853 = vmul.f32 %v810, %v810
  %v854 = vmin.f32 16.0, %v853
  %v855 = vmul.f32 %v854, 2.1237322e-06
  %v856 = vadd.f32 %v855, 0.00028619796
  %v857 = vmul.f32 %v854, %v856
  %v858 = vadd.f32 %v857, 0.0036580483
  %v859 = vmul.f32 %v854, %v858
  %v860 = vadd.f32 %v859, 0.05243302
  %v861 = vmul.f32 %v854, %v860
  %v862 = vadd.f32 %v861, 0.18741608
  %v863 = vmul.f32 %v854, %v862
  %v864 = vadd.f32 %v863, 1.1283791
  %v865 = vmul.f32 %v810, %v864
  %v866 = vmul.f32 %v854, 3.8918573e-05
  %v867 = vadd.f32 %v866, 0.001143296
  %v868 = vmul.f32 %v854, %v867
  %v869 = vadd.f32 %v868, 0.014752088
  %v870 = vmul.f32 %v854, %v869
  %v871 = vadd.f32 %v870, 0.112945676
  %v872 = vmul.f32 %v854, %v871
  %v873 = vadd.f32 %v872, 0.4994258
  %v874 = vmul.f32 %v854, %v873
  %v875 = vadd.f32 %v874, 1.0
  %v876 = vrcp.pop %v875
  %v877 = vmul.f32 %v875, %v876
  %v878 = vsub.f32 1.0, %v877
  %v879 = vmul.f32 %v876, %v878
  %v880 = vadd.f32 %v876, %v879
  %vm881 = vweird.f32 %v875
  %vm882 = vweird.f32 %v876
  %vm883 = vmor %vm881, %vm882
  %v884 = vsel %vm883, %v876, %v880
  %v885 = vand.u32 2147483647, %v875
  %vm886 = vcmp.eq.f32.partialorder %v885, 8.507059e+37
  %v887 = vand.u32 %v875, 2147483648
  %v888 = vor.u32 1.1754944e-38, %v887
  %v889 = vsel %vm886, %v888, %v884
  %v890 = vmul.f32 %v865, %v889
  %v891 = vmin.f32 %v890, 1.0
  %v892 = vmax.f32 %v891, -1.0
  %v893 = vmul.f32 %v811, %v811
  %v894 = vmin.f32 16.0, %v893
  %v895 = vmul.f32 %v894, 2.1237322e-06
  %v896 = vadd.f32 %v895, 0.00028619796
  %v897 = vmul.f32 %v894, %v896
  %v898 = vadd.f32 %v897, 0.0036580483
  %v899 = vmul.f32 %v894, %v898
  %v900 = vadd.f32 %v899, 0.05243302
  %v901 = vmul.f32 %v894, %v900
  %v902 = vadd.f32 %v901, 0.18741608
  %v903 = vmul.f32 %v894, %v902
  %v904 = vadd.f32 %v903, 1.1283791
  %v905 = vmul.f32 %v811, %v904
  %v906 = vmul.f32 %v894, 3.8918573e-05
  %v907 = vadd.f32 %v906, 0.001143296
  %v908 = vmul.f32 %v894, %v907
  %v909 = vadd.f32 %v908, 0.014752088
  %v910 = vmul.f32 %v894, %v909
  %v911 = vadd.f32 %v910, 0.112945676
  %v912 = vmul.f32 %v894, %v911
  %v913 = vadd.f32 %v912, 0.4994258
  %v914 = vmul.f32 %v894, %v913
  %v915 = vadd.f32 %v914, 1.0
  %v916 = vrcp.pop %v915
  %v917 = vmul.f32 %v915, %v916
  %v918 = vsub.f32 1.0, %v917
  %v919 = vmul.f32 %v916, %v918
  %v920 = vadd.f32 %v916, %v919
  %vm921 = vweird.f32 %v915
  %vm922 = vweird.f32 %v916
  %vm923 = vmor %vm921, %vm922
  %v924 = vsel %vm923, %v916, %v920
  %v925 = vand.u32 2147483647, %v915
  %vm926 = vcmp.eq.f32.partialorder %v925, 8.507059e+37
  %v927 = vand.u32 %v915, 2147483648
  %v928 = vor.u32 1.1754944e-38, %v927
  %v929 = vsel %vm926, %v928, %v924
  %v930 = vmul.f32 %v905, %v929
  %v931 = vmin.f32 %v930, 1.0
  %v932 = vmax.f32 %v931, -1.0
  %v933 = vmul.f32 %v812, %v812
  %v934 = vmin.f32 16.0, %v933
  %v935 = vmul.f32 %v934, 2.1237322e-06
  %v936 = vadd.f32 %v935, 0.00028619796
  %v937 = vmul.f32 %v934, %v936
  %v938 = vadd.f32 %v937, 0.0036580483
  %v939 = vmul.f32 %v934, %v938
  %v940 = vadd.f32 %v939, 0.05243302
  %v941 = vmul.f32 %v934, %v940
  %v942 = vadd.f32 %v941, 0.18741608
  %v943 = vmul.f32 %v934, %v942
  %v944 = vadd.f32 %v943, 1.1283791
  %v945 = vmul.f32 %v812, %v944
  %v946 = vmul.f32 %v934, 3.8918573e-05
  %v947 = vadd.f32 %v946, 0.001143296
  %v948 = vmul.f32 %v934, %v947
  %v949 = vadd.f32 %v948, 0.014752088
  %v950 = vmul.f32 %v934, %v949
  %v951 = vadd.f32 %v950, 0.112945676
  %v952 = vmul.f32 %v934, %v951
  %v953 = vadd.f32 %v952, 0.4994258
  %v954 = vmul.f32 %v934, %v953
  %v955 = vadd.f32 %v954, 1.0
  %v956 = vrcp.pop %v955
  %v957 = vmul.f32 %v955, %v956
  %v958 = vsub.f32 1.0, %v957
  %v959 = vmul.f32 %v956, %v958
  %v960 = vadd.f32 %v956, %v959
  %vm961 = vweird.f32 %v955
  %vm962 = vweird.f32 %v956
  %vm963 = vmor %vm961, %vm962
  %v964 = vsel %vm963, %v956, %v960
  %v965 = vand.u32 2147483647, %v955
  %vm966 = vcmp.eq.f32.partialorder %v965, 8.507059e+37
  %v967 = vand.u32 %v955, 2147483648
  %v968 = vor.u32 1.1754944e-38, %v967
  %v969 = vsel %vm966, %v968, %v964
  %v970 = vmul.f32 %v945, %v969
  %v971 = vmin.f32 %v970, 1.0
  %v972 = vmax.f32 %v971, -1.0
  %v973 = vadd.f32 %v852, 1.0
  %v974 = vadd.f32 %v892, 1.0
  %v975 = vadd.f32 %v932, 1.0
  %v976 = vadd.f32 %v972, 1.0
  %v977 = vmul.f32 %v805, %v973
  %v978 = vmul.f32 %v806, %v974
  %v979 = vmul.f32 %v807, %v975
  %v980 = vmul.f32 %v808, %v976
  %981 = vrot.lane.b32.xlu0 %v977, 17
  %v982 = vpop.permute.xlu0 %981
  %983 = vrot.lane.b32.xlu0 %v978, 17
  %v984 = vpop.permute.xlu0 %983
  %v985 = vsel %vm174, %v982, %v984
  %v986 = vsel %vm174, %v984, %v982
  %v987 = vmul.f32 %v986, %v180
  %v988 = vmul.f32 %v985, %v181
  %989 = vst [vmem:[#allocation3] sm:$0xf] %v987
  %990 = vst [vmem:[#allocation3 + $0x8] sm:$0xf] %v988
  %991 = vrot.lane.b32.xlu0 %v977, 16
  %v992 = vpop.permute.xlu0 %991
  %993 = vrot.lane.b32.xlu0 %v978, 16
  %v994 = vpop.permute.xlu0 %993
  %v995 = vsel %vm200, %v992, %v994
  %v996 = vsel %vm200, %v994, %v992
  %v997 = vmul.f32 %v996, %v206
  %v998 = vmul.f32 %v995, %v207
  %999 = vst [vmem:[#allocation3 + $0x20] sm:$0xf] %v997
  %1000 = vst [vmem:[#allocation3 + $0x28] sm:$0xf] %v998
  %1001 = vrot.lane.b32.xlu0 %v977, 15
  %v1002 = vpop.permute.xlu0 %1001
  %1003 = vrot.lane.b32.xlu0 %v978, 15
  %v1004 = vpop.permute.xlu0 %1003
  %v1005 = vsel %vm226, %v1002, %v1004
  %v1006 = vsel %vm226, %v1004, %v1002
  %v1007 = vmul.f32 %v1006, %v232
  %v1008 = vmul.f32 %v1005, %v233
  %1009 = vst [vmem:[#allocation3 + $0x40] sm:$0xf] %v1007
  %1010 = vst [vmem:[#allocation3 + $0x48] sm:$0xf] %v1008
  %1011 = vrot.lane.b32.xlu0 %v977, 1
  %v1012 = vpop.permute.xlu0 %1011
  %1013 = vrot.lane.b32.xlu0 %v978, 1
  %v1014 = vpop.permute.xlu0 %1013
  %v1015 = vsel %vm252, %v1012, %v1014
  %v1016 = vsel %vm252, %v1014, %v1012
  %v1017 = vmul.f32 %v1016, %v258
  %v1018 = vmul.f32 %v1015, %v259
  %1019 = vst [vmem:[#allocation3 + $0x60] sm:$0xf] %v1017
  %1020 = vst [vmem:[#allocation3 + $0x68] sm:$0xf] %v1018
  %v1021 = vmul.f32 %v977, %v271
  %v1022 = vmul.f32 %v978, %v272
  %1023 = vst [vmem:[#allocation3 + $0x80] sm:$0xf] %v1021
  %1024 = vst [vmem:[#allocation3 + $0x88] sm:$0xf] %v1022
  %1025 = vrot.lane.b32.xlu0 %v977, 127
  %v1026 = vpop.permute.xlu0 %1025
  %1027 = vrot.lane.b32.xlu0 %v978, 127
  %v1028 = vpop.permute.xlu0 %1027
  %v1029 = vsel %vm291, %v1026, %v1028
  %v1030 = vsel %vm291, %v1028, %v1026
  %v1031 = vmul.f32 %v1029, %v297
  %v1032 = vmul.f32 %v1030, %v298
  %1033 = vst [vmem:[#allocation3 + $0xa0] sm:$0xf] %v1031
  %1034 = vst [vmem:[#allocation3 + $0xa8] sm:$0xf] %v1032
  %1035 = vrot.lane.b32.xlu0 %v977, 113
  %v1036 = vpop.permute.xlu0 %1035
  %1037 = vrot.lane.b32.xlu0 %v978, 113
  %v1038 = vpop.permute.xlu0 %1037
  %v1039 = vsel %vm317, %v1036, %v1038
  %v1040 = vsel %vm317, %v1038, %v1036
  %v1041 = vmul.f32 %v1039, %v323
  %v1042 = vmul.f32 %v1040, %v324
  %1043 = vst [vmem:[#allocation3 + $0xc0] sm:$0xf] %v1041
  %1044 = vst [vmem:[#allocation3 + $0xc8] sm:$0xf] %v1042
  %1045 = vrot.lane.b32.xlu0 %v977, 112
  %v1046 = vpop.permute.xlu0 %1045
  %1047 = vrot.lane.b32.xlu0 %v978, 112
  %v1048 = vpop.permute.xlu0 %1047
  %v1049 = vsel %vm343, %v1046, %v1048
  %v1050 = vsel %vm343, %v1048, %v1046
  %v1051 = vmul.f32 %v1049, %v349
  %v1052 = vmul.f32 %v1050, %v350
  %1053 = vst [vmem:[#allocation3 + $0xe0] sm:$0xf] %v1051
  %1054 = vst [vmem:[#allocation3 + $0xe8] sm:$0xf] %v1052
  %1055 = vrot.lane.b32.xlu0 %v977, 111
  %v1056 = vpop.permute.xlu0 %1055
  %1057 = vrot.lane.b32.xlu0 %v978, 111
  %v1058 = vpop.permute.xlu0 %1057
  %v1059 = vsel %vm369, %v1056, %v1058
  %v1060 = vsel %vm369, %v1058, %v1056
  %v1061 = vmul.f32 %v1059, %v375
  %v1062 = vmul.f32 %v1060, %v376
  %1063 = vst [vmem:[#allocation3 + $0x100] sm:$0xf] %v1061
  %1064 = vst [vmem:[#allocation3 + $0x108] sm:$0xf] %v1062
  %1065 = vrot.lane.b32.xlu0 %v979, 17
  %v1066 = vpop.permute.xlu0 %1065
  %1067 = vrot.lane.b32.xlu0 %v980, 17
  %v1068 = vpop.permute.xlu0 %1067
  %v1069 = vsel %vm174, %v1066, %v1068
  %v1070 = vsel %vm174, %v1068, %v1066
  %v1071 = vmul.f32 %v1070, %v180
  %v1072 = vmul.f32 %v1069, %v181
  %1073 = vst [vmem:[#allocation3 + $0x10] sm:$0xf] %v1071
  %1074 = vst [vmem:[#allocation3 + $0x18] sm:$0xf] %v1072
  %1075 = vrot.lane.b32.xlu0 %v979, 16
  %v1076 = vpop.permute.xlu0 %1075
  %1077 = vrot.lane.b32.xlu0 %v980, 16
  %v1078 = vpop.permute.xlu0 %1077
  %v1079 = vsel %vm200, %v1076, %v1078
  %v1080 = vsel %vm200, %v1078, %v1076
  %v1081 = vmul.f32 %v1080, %v206
  %v1082 = vmul.f32 %v1079, %v207
  %1083 = vst [vmem:[#allocation3 + $0x30] sm:$0xf] %v1081
  %1084 = vst [vmem:[#allocation3 + $0x38] sm:$0xf] %v1082
  %1085 = vrot.lane.b32.xlu0 %v979, 15
  %v1086 = vpop.permute.xlu0 %1085
  %1087 = vrot.lane.b32.xlu0 %v980, 15
  %v1088 = vpop.permute.xlu0 %1087
  %v1089 = vsel %vm226, %v1086, %v1088
  %v1090 = vsel %vm226, %v1088, %v1086
  %v1091 = vmul.f32 %v1090, %v232
  %v1092 = vmul.f32 %v1089, %v233
  %1093 = vst [vmem:[#allocation3 + $0x50] sm:$0xf] %v1091
  %1094 = vst [vmem:[#allocation3 + $0x58] sm:$0xf] %v1092
  %1095 = vrot.lane.b32.xlu0 %v979, 1
  %v1096 = vpop.permute.xlu0 %1095
  %1097 = vrot.lane.b32.xlu0 %v980, 1
  %v1098 = vpop.permute.xlu0 %1097
  %v1099 = vsel %vm252, %v1096, %v1098
  %v1100 = vsel %vm252, %v1098, %v1096
  %v1101 = vmul.f32 %v1100, %v258
  %v1102 = vmul.f32 %v1099, %v259
  %1103 = vst [vmem:[#allocation3 + $0x70] sm:$0xf] %v1101
  %1104 = vst [vmem:[#allocation3 + $0x78] sm:$0xf] %v1102
  %v1105 = vmul.f32 %v979, %v271
  %v1106 = vmul.f32 %v980, %v272
  %1107 = vst [vmem:[#allocation3 + $0x90] sm:$0xf] %v1105
  %1108 = vst [vmem:[#allocation3 + $0x98] sm:$0xf] %v1106
  %1109 = vrot.lane.b32.xlu0 %v979, 127
  %v1110 = vpop.permute.xlu0 %1109
  %1111 = vrot.lane.b32.xlu0 %v980, 127
  %v1112 = vpop.permute.xlu0 %1111
  %v1113 = vsel %vm291, %v1110, %v1112
  %v1114 = vsel %vm291, %v1112, %v1110
  %v1115 = vmul.f32 %v1113, %v297
  %v1116 = vmul.f32 %v1114, %v298
  %1117 = vst [vmem:[#allocation3 + $0xb0] sm:$0xf] %v1115
  %1118 = vst [vmem:[#allocation3 + $0xb8] sm:$0xf] %v1116
  %1119 = vrot.lane.b32.xlu0 %v979, 113
  %v1120 = vpop.permute.xlu0 %1119
  %1121 = vrot.lane.b32.xlu0 %v980, 113
  %v1122 = vpop.permute.xlu0 %1121
  %v1123 = vsel %vm317, %v1120, %v1122
  %v1124 = vsel %vm317, %v1122, %v1120
  %v1125 = vmul.f32 %v1123, %v323
  %v1126 = vmul.f32 %v1124, %v324
  %1127 = vst [vmem:[#allocation3 + $0xd0] sm:$0xf] %v1125
  %1128 = vst [vmem:[#allocation3 + $0xd8] sm:$0xf] %v1126
  %1129 = vrot.lane.b32.xlu0 %v979, 112
  %v1130 = vpop.permute.xlu0 %1129
  %1131 = vrot.lane.b32.xlu0 %v980, 112
  %v1132 = vpop.permute.xlu0 %1131
  %v1133 = vsel %vm343, %v1130, %v1132
  %v1134 = vsel %vm343, %v1132, %v1130
  %v1135 = vmul.f32 %v1133, %v349
  %v1136 = vmul.f32 %v1134, %v350
  %1137 = vst [vmem:[#allocation3 + $0xf0] sm:$0xf] %v1135
  %1138 = vst [vmem:[#allocation3 + $0xf8] sm:$0xf] %v1136
  %1139 = vrot.lane.b32.xlu0 %v979, 111
  %v1140 = vpop.permute.xlu0 %1139
  %1141 = vrot.lane.b32.xlu0 %v980, 111
  %v1142 = vpop.permute.xlu0 %1141
  %v1143 = vsel %vm369, %v1140, %v1142
  %v1144 = vsel %vm369, %v1142, %v1140
  %v1145 = vmul.f32 %v1143, %v375
  %v1146 = vmul.f32 %v1144, %v376
  %1147 = vst [vmem:[#allocation3 + $0x110] sm:$0xf] %v1145
  %1148 = vst [vmem:[#allocation3 + $0x118] sm:$0xf] %v1146
  %v1149 = vld [vmem:[%s3] sm:$0xff]
  %v1150 = vld [vmem:[%s3 + $0x8] sm:$0xf]
  %v1151 = vld [vmem:[#allocation3] sm:$0xff]
  %v1152 = vld [vmem:[#allocation3 + $0x8] sm:$0xff]
  %v1153 = vld [vmem:[#allocation3 + $0x10] sm:$0xff]
  %v1154 = vld [vmem:[#allocation3 + $0x18] sm:$0xff]
  %v1155 = vld [vmem:[#allocation3 + $0x20] sm:$0xff]
  %v1156 = vld [vmem:[#allocation3 + $0x28] sm:$0xff]
  %v1157 = vld [vmem:[#allocation3 + $0x30] sm:$0xff]
  %v1158 = vld [vmem:[#allocation3 + $0x38] sm:$0xff]
  %v1159 = vld [vmem:[#allocation3 + $0x40] sm:$0xff]
  %v1160 = vld [vmem:[#allocation3 + $0x48] sm:$0xff]
  %v1161 = vld [vmem:[#allocation3 + $0x50] sm:$0xff]
  %v1162 = vld [vmem:[#allocation3 + $0x58] sm:$0xff]
  %v1163 = vld [vmem:[#allocation3 + $0x60] sm:$0xff]
  %v1164 = vld [vmem:[#allocation3 + $0x68] sm:$0xff]
  %v1165 = vld [vmem:[#allocation3 + $0x70] sm:$0xff]
  %v1166 = vld [vmem:[#allocation3 + $0x78] sm:$0xff]
  %v1167 = vld [vmem:[#allocation3 + $0x80] sm:$0xff]
  %v1168 = vld [vmem:[#allocation3 + $0x88] sm:$0xff]
  %v1169 = vld [vmem:[#allocation3 + $0x90] sm:$0xff]
  %v1170 = vld [vmem:[#allocation3 + $0x98] sm:$0xff]
  %v1171 = vld [vmem:[#allocation3 + $0xa0] sm:$0xff]
  %v1172 = vld [vmem:[#allocation3 + $0xa8] sm:$0xff]
  %v1173 = vld [vmem:[#allocation3 + $0xb0] sm:$0xff]
  %v1174 = vld [vmem:[#allocation3 + $0xb8] sm:$0xff]
  %v1175 = vld [vmem:[#allocation3 + $0xc0] sm:$0xff]
  %v1176 = vld [vmem:[#allocation3 + $0xc8] sm:$0xff]
  %v1177 = vld [vmem:[#allocation3 + $0xd0] sm:$0xff]
  %v1178 = vld [vmem:[#allocation3 + $0xd8] sm:$0xff]
  %v1179 = vld [vmem:[#allocation3 + $0xe0] sm:$0xff]
  %v1180 = vld [vmem:[#allocation3 + $0xe8] sm:$0xff]
  %v1181 = vld [vmem:[#allocation3 + $0xf0] sm:$0xff]
  %v1182 = vld [vmem:[#allocation3 + $0xf8] sm:$0xff]
  %v1183 = vld [vmem:[#allocation3 + $0x100] sm:$0xff]
  %v1184 = vld [vmem:[#allocation3 + $0x108] sm:$0xff]
  %v1185 = vld [vmem:[#allocation3 + $0x110] sm:$0xff]
  %v1186 = vld [vmem:[#allocation3 + $0x118] sm:$0xff]
  %v1187 = vld [vmem:[#allocation3 + $0x120] sm:$0xff]
  %v1188 = vld [vmem:[#allocation3 + $0x128] sm:$0xff]
  %v1189 = vld [vmem:[#allocation3 + $0x130] sm:$0xff]
  %v1190 = vld [vmem:[#allocation3 + $0x138] sm:$0xff]
  %vm1191 = vcmask 654336
  %v1193 = vsel %vm1191, %v1149, 0
  %v1196 = vsel %vm1191, %v1150, 0
  %1198 = vmatpush.msra.mxu0 0.0
  %1199 = vmatpush.msra.mxu0 0.0
  %1200 = vmatpush.msra.mxu0 0.0
  %1201 = vmatpush.msra.mxu0 0.0
  %1202 = vmatpush.msra.mxu0 0.0
  %1203 = vmatpush.msra.mxu0 0.0
  %1204 = vmatpush.msra.mxu0 %v1187
  %1205 = vmatpush.msra.mxu0 %v1183
  %1206 = vmatpush.msra.mxu0 %v1179
  %1207 = vmatpush.msra.mxu0 %v1175
  %1208 = vmatpush.msra.mxu0 %v1171
  %1209 = vmatpush.msra.mxu0 %v1167
  %1210 = vmatpush.msra.mxu0 %v1163
  %1211 = vmatpush.msra.mxu0 %v1159
  %1212 = vmatpush.msra.mxu0 %v1155
  %1213 = vmatpush.msra.mxu0 %v1151
  %1214 = vmatmul.f32.gmra.mxu0 %v1193
  %v1215 = vpop.f32.mrf.mxu0
  %v1216 = vadd.f32 0.0, %v1215
  %1217 = vmatmul.f32.gmra.mxu0 %v1196
  %v1218 = vpop.f32.mrf.mxu0
  %v1219 = vadd.f32 0.0, %v1218
  %1220 = vdwg.mxu0
  %1221 = vmatpush.msra.mxu0 0.0
  %1222 = vmatpush.msra.mxu0 0.0
  %1223 = vmatpush.msra.mxu0 0.0
  %1224 = vmatpush.msra.mxu0 0.0
  %1225 = vmatpush.msra.mxu0 0.0
  %1226 = vmatpush.msra.mxu0 0.0
  %1227 = vmatpush.msra.mxu0 %v1188
  %1228 = vmatpush.msra.mxu0 %v1184
  %1229 = vmatpush.msra.mxu0 %v1180
  %1230 = vmatpush.msra.mxu0 %v1176
  %1231 = vmatpush.msra.mxu0 %v1172
  %1232 = vmatpush.msra.mxu0 %v1168
  %1233 = vmatpush.msra.mxu0 %v1164
  %1234 = vmatpush.msra.mxu0 %v1160
  %1235 = vmatpush.msra.mxu0 %v1156
  %1236 = vmatpush.msra.mxu0 %v1152
  %1237 = vmatmul.f32.gmra.mxu0 %v1193
  %v1238 = vpop.f32.mrf.mxu0
  %v1239 = vadd.f32 0.0, %v1238
  %1240 = vmatmul.f32.gmra.mxu0 %v1196
  %v1241 = vpop.f32.mrf.mxu0
  %v1242 = vadd.f32 0.0, %v1241
  %1243 = vdwg.mxu0
  %1244 = vmatpush.msra.mxu0 0.0
  %1245 = vmatpush.msra.mxu0 0.0
  %1246 = vmatpush.msra.mxu0 0.0
  %1247 = vmatpush.msra.mxu0 0.0
  %1248 = vmatpush.msra.mxu0 0.0
  %1249 = vmatpush.msra.mxu0 0.0
  %1250 = vmatpush.msra.mxu0 %v1189
  %1251 = vmatpush.msra.mxu0 %v1185
  %1252 = vmatpush.msra.mxu0 %v1181
  %1253 = vmatpush.msra.mxu0 %v1177
  %1254 = vmatpush.msra.mxu0 %v1173
  %1255 = vmatpush.msra.mxu0 %v1169
  %1256 = vmatpush.msra.mxu0 %v1165
  %1257 = vmatpush.msra.mxu0 %v1161
  %1258 = vmatpush.msra.mxu0 %v1157
  %1259 = vmatpush.msra.mxu0 %v1153
  %1260 = vmatmul.f32.gmra.mxu0 %v1193
  %v1261 = vpop.f32.mrf.mxu0
  %v1262 = vadd.f32 0.0, %v1261
  %1263 = vmatmul.f32.gmra.mxu0 %v1196
  %v1264 = vpop.f32.mrf.mxu0
  %v1265 = vadd.f32 0.0, %v1264
  %1266 = vdwg.mxu0
  %1267 = vmatpush.msra.mxu0 0.0
  %1268 = vmatpush.msra.mxu0 0.0
  %1269 = vmatpush.msra.mxu0 0.0
  %1270 = vmatpush.msra.mxu0 0.0
  %1271 = vmatpush.msra.mxu0 0.0
  %1272 = vmatpush.msra.mxu0 0.0
  %1273 = vmatpush.msra.mxu0 %v1190
  %1274 = vmatpush.msra.mxu0 %v1186
  %1275 = vmatpush.msra.mxu0 %v1182
  %1276 = vmatpush.msra.mxu0 %v1178
  %1277 = vmatpush.msra.mxu0 %v1174
  %1278 = vmatpush.msra.mxu0 %v1170
  %1279 = vmatpush.msra.mxu0 %v1166
  %1280 = vmatpush.msra.mxu0 %v1162
  %1281 = vmatpush.msra.mxu0 %v1158
  %1282 = vmatpush.msra.mxu0 %v1154
  %1283 = vmatmul.f32.gmra.mxu0 %v1193
  %v1284 = vpop.f32.mrf.mxu0
  %v1285 = vadd.f32 0.0, %v1284
  %1286 = vmatmul.f32.gmra.mxu0 %v1196
  %v1287 = vpop.f32.mrf.mxu0
  %v1288 = vadd.f32 0.0, %v1287
  %1289 = vdwg.mxu0
  %1290 = vst [vmem:[%s4] sm:$0xff] %v1216
  %1291 = vst [vmem:[%s4 + $0x8] sm:$0xff] %v1239
  %1292 = vst [vmem:[%s4 + $0x10] sm:$0xf] %v1219
  %1293 = vst [vmem:[%s4 + $0x18] sm:$0xf] %v1242
  %s1294 = scalar_lea.vmem %s4, 32
  %1295 = vst [vmem:[%s1294] sm:$0xff] %v1262
  %1296 = vst [vmem:[%s1294 + $0x8] sm:$0xff] %v1285
  %1297 = vst [vmem:[%s1294 + $0x10] sm:$0xf] %v1265
  %1298 = vst [vmem:[%s1294 + $0x18] sm:$0xf] %v1288
  // Predicated region
  $region18: #{cab_forward.1} parent=0 // pred_check
    _
  $region19: #{cab_forward.1} parent=0 // pred_check_branch
    %1300 = sbr.rel (0) target = $region21
  $region20: #{cab_forward.1} parent=0 // pred_region
    _
  $region21: #{cab_forward.1} parent=0 // pred_fallthru
    _
  // Predicated region
  $region22: #{cab_forward.1} parent=0 // pred_check
    _
  $region23: #{cab_forward.1} parent=0 // pred_check_branch
    %1302 = sbr.rel (0) target = $region25
  $region24: #{cab_forward.1} parent=0 // pred_region
    _
  $region25: #{cab_forward.1} parent=0 // pred_fallthru
    _

</llo_original>
